<compile_context>
chip_gen: v5e
topology: v5e:2x2
jax: 0.10.0
libtpu: 0.0.40
codegen_flags: <defaults>
</compile_context>

<pallas_src>
import math
import jax
import jax.numpy as jnp
from jax import lax
from jax.experimental import pallas as pl
from jax.experimental.pallas import tpu as pltpu

# ----- small config consistent with the CSIBERT architecture -----
B, S, F = 2, 8, 16          # batch, sequence_length, feature_dim
H, NH, I, L = 32, 4, 64, 2  # hidden, heads, intermediate, num layers
DH = H // NH                # head dim
BS = B * S                  # flattened token count
MAX_TIME = 128              # scaled-down nn.Embedding(1024, 768)
MAX_POS = 128               # scaled-down max_position_embeddings
EPS = 1e-12
OUT_PAD = 128               # lane-dense padded output width (first F cols are real)
DTYPE = jnp.float32


def _layernorm(h, g, b):
    mu = jnp.mean(h, axis=-1, keepdims=True)
    var = jnp.mean((h - mu) ** 2, axis=-1, keepdims=True)
    return (h - mu) * lax.rsqrt(var + EPS) * g + b


def _gelu_exact(x):
    return 0.5 * x * (1.0 + lax.erf(x / math.sqrt(2.0)))


# ---------------- fused kernel ----------------
def csibert_kernel(x_ref, fw_ref, fb_ref, emb_ref, eg_ref, eb_ref,
                   wqkv_ref, bqkv_ref, wo_ref, bo_ref, g1_ref, b1_ref,
                   wi_ref, bi_ref, w2_ref, b2_ref, g2_ref, b2n_ref,
                   ow_ref, ob_ref, o_ref):
    f32 = jnp.float32

    # ----- embeddings -----
    x = x_ref[...]                                                   # (BS, F)
    h = jnp.dot(x, fw_ref[...], preferred_element_type=f32) + fb_ref[...]
    # broadcast (S, H) embedding sum over batch (free reshape, no concat temp)
    h = (h.reshape(B, S, H) + emb_ref[...]).reshape(BS, H)
    h = _layernorm(h, eg_ref[...], eb_ref[...])

    for l in range(L):                                               # static unroll over layers
        # fused QKV projection; 1/sqrt(DH) already folded into the Q columns
        qkv = jnp.dot(h, wqkv_ref[l], preferred_element_type=f32) + bqkv_ref[l]  # (BS, 3H)
        qkv3 = qkv.reshape(B, S, 3 * H)                              # leading-dim split (free)

        # relayout once per layer to (NH*B, S, DH): head slices stacked on a new
        # leading axis, then leading dims merged (both cheap on TPU)
        def split_heads(off):
            return jnp.stack(
                [qkv3[:, :, off + hi * DH: off + (hi + 1) * DH] for hi in range(NH)],
                axis=0).reshape(NH * B, S, DH)

        qh = split_heads(0)
        kh = split_heads(H)
        vh = split_heads(2 * H)

        # two batched dot_generals + one softmax for ALL (batch, head) pairs
        scores = jnp.einsum('bqd,bkd->bqk', qh, kh,
                            preferred_element_type=f32)              # (NH*B, S, S)
        m = jnp.max(scores, axis=-1, keepdims=True)
        e = jnp.exp(scores - m)
        probs = e / jnp.sum(e, axis=-1, keepdims=True)               # exact divide (parity)
        ctx = jnp.einsum('bqk,bkd->bqd', probs, vh,
                         preferred_element_type=f32)                 # (NH*B, S, DH)

        # merge heads back to (BS, H): leading-axis split + lane concat, all in registers
        ctx4 = ctx.reshape(NH, B, S, DH)
        ctx = jnp.concatenate([ctx4[hi] for hi in range(NH)], axis=-1).reshape(BS, H)

        attn = jnp.dot(ctx, wo_ref[l], preferred_element_type=f32) + bo_ref[l]
        h = _layernorm(attn + h, g1_ref[l], b1_ref[l])

        inter = _gelu_exact(
            jnp.dot(h, wi_ref[l], preferred_element_type=f32) + bi_ref[l])
        ffn = jnp.dot(inter, w2_ref[l], preferred_element_type=f32) + b2_ref[l]
        h = _layernorm(ffn + h, g2_ref[l], b2n_ref[l])

    # ----- output projection (padded to 128 lanes -> unmasked, lane-dense store) -----
    o_ref[...] = jnp.dot(h, ow_ref[...], preferred_element_type=f32) + ob_ref[...]


# ---------------- wrapper ----------------
@jax.jit
def csibert_forward(inputs, params):
    # TODO(synk): output_attentions=True branch (returning per-layer attention
    # probabilities) is not implemented; only the default predictions path is.
    x2d = inputs.reshape(BS, F)
    # reference uses time_indices = arange(S): first S rows of the embedding tables;
    # token_type ids are all zero -> row 0 of the token-type table
    emb = (params["time_emb"][:S]
           + params["bert_pos_emb"][:S]
           + params["tok_type_emb"][0:1])                            # (S, H)

    args = (x2d, params["feat_w"], params["feat_b"], emb,
            params["emb_ln_g"], params["emb_ln_b"],
            params["wqkv"], params["bqkv"], params["wo"], params["bo"],
            params["ln1_g"], params["ln1_b"],
            params["wi"], params["bi"], params["w2"], params["b2"],
            params["ln2_g"], params["ln2_b"],
            params["out_w_pad"], params["out_b_pad"])

    vmem = pl.BlockSpec(memory_space=pltpu.MemorySpace.VMEM)
    out2d = pl.pallas_call(
        csibert_kernel,
        out_shape=jax.ShapeDtypeStruct((BS, OUT_PAD), DTYPE),
        in_specs=[vmem] * len(args),
        out_specs=vmem,
    )(*args)
    return out2d[:, :F].reshape(B, S, F)


# ---------------- deterministic parameter init ----------------
def init_params(key):
    def nxt():
        nonlocal key
        key, sub = jax.random.split(key)
        return sub

    def w(shape, scale=0.02):
        return (scale * jax.random.normal(nxt(), shape)).astype(DTYPE)

    ones = lambda shape: jnp.ones(shape, DTYPE)
    zeros = lambda shape: jnp.zeros(shape, DTYPE)

    out_w = w((H, F))
    out_w_pad = jnp.zeros((H, OUT_PAD), DTYPE).at[:, :F].set(out_w)
    out_b_pad = jnp.zeros((1, OUT_PAD), DTYPE)

    params = {
        "time_emb": w((MAX_TIME, H)),
        "bert_pos_emb": w((MAX_POS, H)),
        "tok_type_emb": w((2, H)),
        "feat_w": w((F, H)), "feat_b": zeros((1, H)),
        "emb_ln_g": ones((1, H)), "emb_ln_b": zeros((1, H)),
        "out_w_pad": out_w_pad, "out_b_pad": out_b_pad,
    }

    attn_scale = 1.0 / math.sqrt(DH)
    wqkv, bqkv, wo, bo, g1, b1 = [], [], [], [], [], []
    wi, bi, w2, b2, g2, b2n = [], [], [], [], [], []
    for _ in range(L):
        wq, wk, wv = w((H, H)), w((H, H)), w((H, H))
        # fold the 1/sqrt(DH) attention scale into the Q projection (exact:
        # (q*s)·k == (q·k)*s). Q bias columns would also be scaled; they are zero here.
        wqkv.append(jnp.concatenate([wq * attn_scale, wk, wv], axis=1))  # (H, 3H)
        bqkv.append(zeros((1, 3 * H)))
        wo.append(w((H, H))); bo.append(zeros((1, H)))
        g1.append(ones((1, H))); b1.append(zeros((1, H)))
        wi.append(w((H, I))); bi.append(zeros((1, I)))
        w2.append(w((I, H))); b2.append(zeros((1, H)))
        g2.append(ones((1, H))); b2n.append(zeros((1, H)))

    stack = lambda xs: jnp.stack(xs, axis=0)
    params.update({
        "wqkv": stack(wqkv), "bqkv": stack(bqkv),
        "wo": stack(wo), "bo": stack(bo),
        "ln1_g": stack(g1), "ln1_b": stack(b1),
        "wi": stack(wi), "bi": stack(bi),
        "w2": stack(w2), "b2": stack(b2),
        "ln2_g": stack(g2), "ln2_b": stack(b2n),
    })
    return params


if __name__ == "__main__":
    key = jax.random.PRNGKey(0)
    pkey, xkey = jax.random.split(key)
    params = init_params(pkey)
    inputs = jax.random.normal(xkey, (B, S, F), dtype=DTYPE)

    preds = csibert_forward(inputs, params)
    jax.block_until_ready(preds)
    assert preds.shape == (B, S, F) and preds.dtype == DTYPE
    assert bool(jnp.all(jnp.isfinite(preds)))
    print("KERNEL_OK")
</pallas_src>

<mosaic_0001>
module attributes {stable_mosaic.version = 11 : i64} {
  func.func @csibert_kernel(%arg0: memref<16x16xf32, #tpu.memory_space<vmem>>, %arg1: memref<16x32xf32, #tpu.memory_space<vmem>>, %arg2: memref<1x32xf32, #tpu.memory_space<vmem>>, %arg3: memref<8x32xf32, #tpu.memory_space<vmem>>, %arg4: memref<1x32xf32, #tpu.memory_space<vmem>>, %arg5: memref<1x32xf32, #tpu.memory_space<vmem>>, %arg6: memref<2x32x96xf32, #tpu.memory_space<vmem>>, %arg7: memref<2x1x96xf32, #tpu.memory_space<vmem>>, %arg8: memref<2x32x32xf32, #tpu.memory_space<vmem>>, %arg9: memref<2x1x32xf32, #tpu.memory_space<vmem>>, %arg10: memref<2x1x32xf32, #tpu.memory_space<vmem>>, %arg11: memref<2x1x32xf32, #tpu.memory_space<vmem>>, %arg12: memref<2x32x64xf32, #tpu.memory_space<vmem>>, %arg13: memref<2x1x64xf32, #tpu.memory_space<vmem>>, %arg14: memref<2x64x32xf32, #tpu.memory_space<vmem>>, %arg15: memref<2x1x32xf32, #tpu.memory_space<vmem>>, %arg16: memref<2x1x32xf32, #tpu.memory_space<vmem>>, %arg17: memref<2x1x32xf32, #tpu.memory_space<vmem>>, %arg18: memref<32x128xf32, #tpu.memory_space<vmem>>, %arg19: memref<1x128xf32, #tpu.memory_space<vmem>>, %arg20: memref<16x128xf32, #tpu.memory_space<vmem>>) attributes {dimension_semantics = [], scalar_prefetch = 0 : i64, scratch_operands = 0 : i64, tpu.core_type = #tpu.core_type<tc>} {
    %c0 = arith.constant 0 : index
    %c0_0 = arith.constant 0 : index
    %0 = vector.load %arg0[%c0, %c0_0] : memref<16x16xf32, #tpu.memory_space<vmem>>, vector<16x16xf32>
    %c0_1 = arith.constant 0 : index
    %c0_2 = arith.constant 0 : index
    %1 = vector.load %arg1[%c0_1, %c0_2] : memref<16x32xf32, #tpu.memory_space<vmem>>, vector<16x32xf32>
    %cst = arith.constant dense<0.000000e+00> : vector<16x32xf32>
    %2 = tpu.matmul %0, %1, %cst {dimension_numbers = #tpu.dot_dimension_numbers<[1], [0], [0], [1], [0, 0, 1, 1], [], []>} : vector<16x16xf32>, vector<16x32xf32>, vector<16x32xf32> -> vector<16x32xf32>
    %c0_3 = arith.constant 0 : index
    %c0_4 = arith.constant 0 : index
    %3 = vector.load %arg2[%c0_3, %c0_4] : memref<1x32xf32, #tpu.memory_space<vmem>>, vector<1x32xf32>
    %4 = vector.broadcast %3 : vector<1x32xf32> to vector<16x32xf32>
    %5 = arith.addf %2, %4 : vector<16x32xf32>
    %6 = vector.shape_cast %5 : vector<16x32xf32> to vector<2x8x32xf32>
    %c0_5 = arith.constant 0 : index
    %c0_6 = arith.constant 0 : index
    %7 = vector.load %arg3[%c0_5, %c0_6] : memref<8x32xf32, #tpu.memory_space<vmem>>, vector<8x32xf32>
    %8 = vector.shape_cast %7 : vector<8x32xf32> to vector<1x8x32xf32>
    %9 = vector.broadcast %8 : vector<1x8x32xf32> to vector<2x8x32xf32>
    %10 = arith.addf %6, %9 : vector<2x8x32xf32>
    %11 = vector.shape_cast %10 : vector<2x8x32xf32> to vector<16x32xf32>
    %c0_7 = arith.constant 0 : index
    %c0_8 = arith.constant 0 : index
    %12 = vector.load %arg4[%c0_7, %c0_8] : memref<1x32xf32, #tpu.memory_space<vmem>>, vector<1x32xf32>
    %c0_9 = arith.constant 0 : index
    %c0_10 = arith.constant 0 : index
    %13 = vector.load %arg5[%c0_9, %c0_10] : memref<1x32xf32, #tpu.memory_space<vmem>>, vector<1x32xf32>
    %cst_11 = arith.constant dense<0.000000e+00> : vector<16xf32>
    %14 = vector.multi_reduction <add>, %11, %cst_11 [1] : vector<16x32xf32> to vector<16xf32>
    %15 = vector.shape_cast %14 : vector<16xf32> to vector<16x1xf32>
    %cst_12 = arith.constant 3.200000e+01 : f32
    %16 = vector.broadcast %cst_12 : f32 to vector<16x1xf32>
    %17 = arith.divf %15, %16 : vector<16x1xf32>
    %18 = vector.broadcast %17 : vector<16x1xf32> to vector<16x32xf32>
    %19 = arith.subf %11, %18 : vector<16x32xf32>
    %20 = arith.mulf %19, %19 : vector<16x32xf32>
    %cst_13 = arith.constant dense<0.000000e+00> : vector<16xf32>
    %21 = vector.multi_reduction <add>, %20, %cst_13 [1] : vector<16x32xf32> to vector<16xf32>
    %22 = vector.shape_cast %21 : vector<16xf32> to vector<16x1xf32>
    %cst_14 = arith.constant 3.200000e+01 : f32
    %23 = vector.broadcast %cst_14 : f32 to vector<16x1xf32>
    %24 = arith.divf %22, %23 : vector<16x1xf32>
    %25 = vector.broadcast %17 : vector<16x1xf32> to vector<16x32xf32>
    %26 = arith.subf %11, %25 : vector<16x32xf32>
    %cst_15 = arith.constant 9.99999996E-13 : f32
    %27 = vector.broadcast %cst_15 : f32 to vector<16x1xf32>
    %28 = arith.addf %24, %27 : vector<16x1xf32>
    %29 = math.rsqrt %28 : vector<16x1xf32>
    %30 = vector.broadcast %29 : vector<16x1xf32> to vector<16x32xf32>
    %31 = arith.mulf %26, %30 : vector<16x32xf32>
    %32 = vector.broadcast %12 : vector<1x32xf32> to vector<16x32xf32>
    %33 = arith.mulf %31, %32 : vector<16x32xf32>
    %34 = vector.broadcast %13 : vector<1x32xf32> to vector<16x32xf32>
    %35 = arith.addf %33, %34 : vector<16x32xf32>
    %c0_16 = arith.constant 0 : index
    %c0_17 = arith.constant 0 : index
    %c0_18 = arith.constant 0 : index
    %36 = vector.load %arg6[%c0_16, %c0_17, %c0_18] : memref<2x32x96xf32, #tpu.memory_space<vmem>>, vector<1x32x96xf32>
    %37 = vector.shape_cast %36 : vector<1x32x96xf32> to vector<32x96xf32>
    %cst_19 = arith.constant dense<0.000000e+00> : vector<16x96xf32>
    %38 = tpu.matmul %35, %37, %cst_19 {dimension_numbers = #tpu.dot_dimension_numbers<[1], [0], [0], [1], [0, 0, 1, 1], [], []>} : vector<16x32xf32>, vector<32x96xf32>, vector<16x96xf32> -> vector<16x96xf32>
    %c0_20 = arith.constant 0 : index
    %c0_21 = arith.constant 0 : index
    %c0_22 = arith.constant 0 : index
    %39 = vector.load %arg7[%c0_20, %c0_21, %c0_22] : memref<2x1x96xf32, #tpu.memory_space<vmem>>, vector<1x1x96xf32>
    %40 = vector.shape_cast %39 : vector<1x1x96xf32> to vector<1x96xf32>
    %41 = vector.broadcast %40 : vector<1x96xf32> to vector<16x96xf32>
    %42 = arith.addf %38, %41 : vector<16x96xf32>
    %43 = vector.shape_cast %42 : vector<16x96xf32> to vector<2x8x96xf32>
    %44 = vector.extract_strided_slice %43 {offsets = [0, 0, 0], sizes = [2, 8, 8], strides = [1, 1, 1]} : vector<2x8x96xf32> to vector<2x8x8xf32>
    %45 = vector.extract_strided_slice %43 {offsets = [0, 0, 8], sizes = [2, 8, 8], strides = [1, 1, 1]} : vector<2x8x96xf32> to vector<2x8x8xf32>
    %46 = vector.extract_strided_slice %43 {offsets = [0, 0, 16], sizes = [2, 8, 8], strides = [1, 1, 1]} : vector<2x8x96xf32> to vector<2x8x8xf32>
    %47 = vector.extract_strided_slice %43 {offsets = [0, 0, 24], sizes = [2, 8, 8], strides = [1, 1, 1]} : vector<2x8x96xf32> to vector<2x8x8xf32>
    %48 = vector.shape_cast %44 : vector<2x8x8xf32> to vector<1x2x8x8xf32>
    %49 = vector.shape_cast %45 : vector<2x8x8xf32> to vector<1x2x8x8xf32>
    %50 = vector.shape_cast %46 : vector<2x8x8xf32> to vector<1x2x8x8xf32>
    %51 = vector.shape_cast %47 : vector<2x8x8xf32> to vector<1x2x8x8xf32>
    %52 = tpu.concatenate %48, %49, %50, %51 in 0 : vector<1x2x8x8xf32>, vector<1x2x8x8xf32>, vector<1x2x8x8xf32>, vector<1x2x8x8xf32> -> vector<4x2x8x8xf32>
    %53 = vector.shape_cast %52 : vector<4x2x8x8xf32> to vector<8x8x8xf32>
    %54 = vector.extract_strided_slice %43 {offsets = [0, 0, 32], sizes = [2, 8, 8], strides = [1, 1, 1]} : vector<2x8x96xf32> to vector<2x8x8xf32>
    %55 = vector.extract_strided_slice %43 {offsets = [0, 0, 40], sizes = [2, 8, 8], strides = [1, 1, 1]} : vector<2x8x96xf32> to vector<2x8x8xf32>
    %56 = vector.extract_strided_slice %43 {offsets = [0, 0, 48], sizes = [2, 8, 8], strides = [1, 1, 1]} : vector<2x8x96xf32> to vector<2x8x8xf32>
    %57 = vector.extract_strided_slice %43 {offsets = [0, 0, 56], sizes = [2, 8, 8], strides = [1, 1, 1]} : vector<2x8x96xf32> to vector<2x8x8xf32>
    %58 = vector.shape_cast %54 : vector<2x8x8xf32> to vector<1x2x8x8xf32>
    %59 = vector.shape_cast %55 : vector<2x8x8xf32> to vector<1x2x8x8xf32>
    %60 = vector.shape_cast %56 : vector<2x8x8xf32> to vector<1x2x8x8xf32>
    %61 = vector.shape_cast %57 : vector<2x8x8xf32> to vector<1x2x8x8xf32>
    %62 = tpu.concatenate %58, %59, %60, %61 in 0 : vector<1x2x8x8xf32>, vector<1x2x8x8xf32>, vector<1x2x8x8xf32>, vector<1x2x8x8xf32> -> vector<4x2x8x8xf32>
    %63 = vector.shape_cast %62 : vector<4x2x8x8xf32> to vector<8x8x8xf32>
    %64 = vector.extract_strided_slice %43 {offsets = [0, 0, 64], sizes = [2, 8, 8], strides = [1, 1, 1]} : vector<2x8x96xf32> to vector<2x8x8xf32>
    %65 = vector.extract_strided_slice %43 {offsets = [0, 0, 72], sizes = [2, 8, 8], strides = [1, 1, 1]} : vector<2x8x96xf32> to vector<2x8x8xf32>
    %66 = vector.extract_strided_slice %43 {offsets = [0, 0, 80], sizes = [2, 8, 8], strides = [1, 1, 1]} : vector<2x8x96xf32> to vector<2x8x8xf32>
    %67 = vector.extract_strided_slice %43 {offsets = [0, 0, 88], sizes = [2, 8, 8], strides = [1, 1, 1]} : vector<2x8x96xf32> to vector<2x8x8xf32>
    %68 = vector.shape_cast %64 : vector<2x8x8xf32> to vector<1x2x8x8xf32>
    %69 = vector.shape_cast %65 : vector<2x8x8xf32> to vector<1x2x8x8xf32>
    %70 = vector.shape_cast %66 : vector<2x8x8xf32> to vector<1x2x8x8xf32>
    %71 = vector.shape_cast %67 : vector<2x8x8xf32> to vector<1x2x8x8xf32>
    %72 = tpu.concatenate %68, %69, %70, %71 in 0 : vector<1x2x8x8xf32>, vector<1x2x8x8xf32>, vector<1x2x8x8xf32>, vector<1x2x8x8xf32> -> vector<4x2x8x8xf32>
    %73 = vector.shape_cast %72 : vector<4x2x8x8xf32> to vector<8x8x8xf32>
    "tpu.trace_start"() <{level = 10 : i32, message = "bqd,bkd->bqk"}> : () -> ()
    %cst_23 = arith.constant dense<0.000000e+00> : vector<8x8x8xf32>
    %74 = tpu.matmul %53, %63, %cst_23 {dimension_numbers = #tpu.dot_dimension_numbers<[2], [2], [1], [1], [0, 0, 0, 1, 1, 1], [0], [0]>} : vector<8x8x8xf32>, vector<8x8x8xf32>, vector<8x8x8xf32> -> vector<8x8x8xf32>
    "tpu.trace_stop"() : () -> ()
    %cst_24 = arith.constant dense<0xFF800000> : vector<8x8xf32>
    %75 = vector.multi_reduction <maximumf>, %74, %cst_24 [2] : vector<8x8x8xf32> to vector<8x8xf32>
    %76 = vector.shape_cast %75 : vector<8x8xf32> to vector<8x8x1xf32>
    %77 = vector.broadcast %76 : vector<8x8x1xf32> to vector<8x8x8xf32>
    %78 = arith.subf %74, %77 : vector<8x8x8xf32>
    %79 = math.exp %78 : vector<8x8x8xf32>
    %cst_25 = arith.constant dense<0.000000e+00> : vector<8x8xf32>
    %80 = vector.multi_reduction <add>, %79, %cst_25 [2] : vector<8x8x8xf32> to vector<8x8xf32>
    %81 = vector.shape_cast %80 : vector<8x8xf32> to vector<8x8x1xf32>
    %82 = vector.broadcast %81 : vector<8x8x1xf32> to vector<8x8x8xf32>
    %83 = arith.divf %79, %82 : vector<8x8x8xf32>
    "tpu.trace_start"() <{level = 10 : i32, message = "bqk,bkd->bqd"}> : () -> ()
    %cst_26 = arith.constant dense<0.000000e+00> : vector<8x8x8xf32>
    %84 = tpu.matmul %83, %73, %cst_26 {dimension_numbers = #tpu.dot_dimension_numbers<[2], [1], [1], [2], [0, 0, 0, 1, 1, 2], [0], [0]>} : vector<8x8x8xf32>, vector<8x8x8xf32>, vector<8x8x8xf32> -> vector<8x8x8xf32>
    "tpu.trace_stop"() : () -> ()
    %85 = vector.shape_cast %84 : vector<8x8x8xf32> to vector<4x2x8x8xf32>
    %86 = vector.extract_strided_slice %85 {offsets = [0, 0, 0, 0], sizes = [1, 2, 8, 8], strides = [1, 1, 1, 1]} : vector<4x2x8x8xf32> to vector<1x2x8x8xf32>
    %87 = vector.shape_cast %86 : vector<1x2x8x8xf32> to vector<2x8x8xf32>
    %88 = vector.extract_strided_slice %85 {offsets = [1, 0, 0, 0], sizes = [1, 2, 8, 8], strides = [1, 1, 1, 1]} : vector<4x2x8x8xf32> to vector<1x2x8x8xf32>
    %89 = vector.shape_cast %88 : vector<1x2x8x8xf32> to vector<2x8x8xf32>
    %90 = vector.extract_strided_slice %85 {offsets = [2, 0, 0, 0], sizes = [1, 2, 8, 8], strides = [1, 1, 1, 1]} : vector<4x2x8x8xf32> to vector<1x2x8x8xf32>
    %91 = vector.shape_cast %90 : vector<1x2x8x8xf32> to vector<2x8x8xf32>
    %92 = vector.extract_strided_slice %85 {offsets = [3, 0, 0, 0], sizes = [1, 2, 8, 8], strides = [1, 1, 1, 1]} : vector<4x2x8x8xf32> to vector<1x2x8x8xf32>
    %93 = vector.shape_cast %92 : vector<1x2x8x8xf32> to vector<2x8x8xf32>
    %94 = tpu.concatenate %87, %89, %91, %93 in 2 : vector<2x8x8xf32>, vector<2x8x8xf32>, vector<2x8x8xf32>, vector<2x8x8xf32> -> vector<2x8x32xf32>
    %95 = vector.shape_cast %94 : vector<2x8x32xf32> to vector<16x32xf32>
    %c0_27 = arith.constant 0 : index
    %c0_28 = arith.constant 0 : index
    %c0_29 = arith.constant 0 : index
    %96 = vector.load %arg8[%c0_27, %c0_28, %c0_29] : memref<2x32x32xf32, #tpu.memory_space<vmem>>, vector<1x32x32xf32>
    %97 = vector.shape_cast %96 : vector<1x32x32xf32> to vector<32x32xf32>
    %cst_30 = arith.constant dense<0.000000e+00> : vector<16x32xf32>
    %98 = tpu.matmul %95, %97, %cst_30 {dimension_numbers = #tpu.dot_dimension_numbers<[1], [0], [0], [1], [0, 0, 1, 1], [], []>} : vector<16x32xf32>, vector<32x32xf32>, vector<16x32xf32> -> vector<16x32xf32>
    %c0_31 = arith.constant 0 : index
    %c0_32 = arith.constant 0 : index
    %c0_33 = arith.constant 0 : index
    %99 = vector.load %arg9[%c0_31, %c0_32, %c0_33] : memref<2x1x32xf32, #tpu.memory_space<vmem>>, vector<1x1x32xf32>
    %100 = vector.shape_cast %99 : vector<1x1x32xf32> to vector<1x32xf32>
    %101 = vector.broadcast %100 : vector<1x32xf32> to vector<16x32xf32>
    %102 = arith.addf %98, %101 : vector<16x32xf32>
    %103 = arith.addf %102, %35 : vector<16x32xf32>
    %c0_34 = arith.constant 0 : index
    %c0_35 = arith.constant 0 : index
    %c0_36 = arith.constant 0 : index
    %104 = vector.load %arg10[%c0_34, %c0_35, %c0_36] : memref<2x1x32xf32, #tpu.memory_space<vmem>>, vector<1x1x32xf32>
    %105 = vector.shape_cast %104 : vector<1x1x32xf32> to vector<1x32xf32>
    %c0_37 = arith.constant 0 : index
    %c0_38 = arith.constant 0 : index
    %c0_39 = arith.constant 0 : index
    %106 = vector.load %arg11[%c0_37, %c0_38, %c0_39] : memref<2x1x32xf32, #tpu.memory_space<vmem>>, vector<1x1x32xf32>
    %107 = vector.shape_cast %106 : vector<1x1x32xf32> to vector<1x32xf32>
    %cst_40 = arith.constant dense<0.000000e+00> : vector<16xf32>
    %108 = vector.multi_reduction <add>, %103, %cst_40 [1] : vector<16x32xf32> to vector<16xf32>
    %109 = vector.shape_cast %108 : vector<16xf32> to vector<16x1xf32>
    %cst_41 = arith.constant 3.200000e+01 : f32
    %110 = vector.broadcast %cst_41 : f32 to vector<16x1xf32>
    %111 = arith.divf %109, %110 : vector<16x1xf32>
    %112 = vector.broadcast %111 : vector<16x1xf32> to vector<16x32xf32>
    %113 = arith.subf %103, %112 : vector<16x32xf32>
    %114 = arith.mulf %113, %113 : vector<16x32xf32>
    %cst_42 = arith.constant dense<0.000000e+00> : vector<16xf32>
    %115 = vector.multi_reduction <add>, %114, %cst_42 [1] : vector<16x32xf32> to vector<16xf32>
    %116 = vector.shape_cast %115 : vector<16xf32> to vector<16x1xf32>
    %cst_43 = arith.constant 3.200000e+01 : f32
    %117 = vector.broadcast %cst_43 : f32 to vector<16x1xf32>
    %118 = arith.divf %116, %117 : vector<16x1xf32>
    %119 = vector.broadcast %111 : vector<16x1xf32> to vector<16x32xf32>
    %120 = arith.subf %103, %119 : vector<16x32xf32>
    %cst_44 = arith.constant 9.99999996E-13 : f32
    %121 = vector.broadcast %cst_44 : f32 to vector<16x1xf32>
    %122 = arith.addf %118, %121 : vector<16x1xf32>
    %123 = math.rsqrt %122 : vector<16x1xf32>
    %124 = vector.broadcast %123 : vector<16x1xf32> to vector<16x32xf32>
    %125 = arith.mulf %120, %124 : vector<16x32xf32>
    %126 = vector.broadcast %105 : vector<1x32xf32> to vector<16x32xf32>
    %127 = arith.mulf %125, %126 : vector<16x32xf32>
    %128 = vector.broadcast %107 : vector<1x32xf32> to vector<16x32xf32>
    %129 = arith.addf %127, %128 : vector<16x32xf32>
    %c0_45 = arith.constant 0 : index
    %c0_46 = arith.constant 0 : index
    %c0_47 = arith.constant 0 : index
    %130 = vector.load %arg12[%c0_45, %c0_46, %c0_47] : memref<2x32x64xf32, #tpu.memory_space<vmem>>, vector<1x32x64xf32>
    %131 = vector.shape_cast %130 : vector<1x32x64xf32> to vector<32x64xf32>
    %cst_48 = arith.constant dense<0.000000e+00> : vector<16x64xf32>
    %132 = tpu.matmul %129, %131, %cst_48 {dimension_numbers = #tpu.dot_dimension_numbers<[1], [0], [0], [1], [0, 0, 1, 1], [], []>} : vector<16x32xf32>, vector<32x64xf32>, vector<16x64xf32> -> vector<16x64xf32>
    %c0_49 = arith.constant 0 : index
    %c0_50 = arith.constant 0 : index
    %c0_51 = arith.constant 0 : index
    %133 = vector.load %arg13[%c0_49, %c0_50, %c0_51] : memref<2x1x64xf32, #tpu.memory_space<vmem>>, vector<1x1x64xf32>
    %134 = vector.shape_cast %133 : vector<1x1x64xf32> to vector<1x64xf32>
    %135 = vector.broadcast %134 : vector<1x64xf32> to vector<16x64xf32>
    %136 = arith.addf %132, %135 : vector<16x64xf32>
    %cst_52 = arith.constant 5.000000e-01 : f32
    %137 = vector.broadcast %cst_52 : f32 to vector<16x64xf32>
    %138 = arith.mulf %137, %136 : vector<16x64xf32>
    %cst_53 = arith.constant 1.41421354 : f32
    %139 = vector.broadcast %cst_53 : f32 to vector<16x64xf32>
    %140 = arith.divf %136, %139 : vector<16x64xf32>
    %141 = math.erf %140 : vector<16x64xf32>
    %cst_54 = arith.constant 1.000000e+00 : f32
    %142 = vector.broadcast %cst_54 : f32 to vector<16x64xf32>
    %143 = arith.addf %142, %141 : vector<16x64xf32>
    %144 = arith.mulf %138, %143 : vector<16x64xf32>
    %c0_55 = arith.constant 0 : index
    %c0_56 = arith.constant 0 : index
    %c0_57 = arith.constant 0 : index
    %145 = vector.load %arg14[%c0_55, %c0_56, %c0_57] : memref<2x64x32xf32, #tpu.memory_space<vmem>>, vector<1x64x32xf32>
    %146 = vector.shape_cast %145 : vector<1x64x32xf32> to vector<64x32xf32>
    %cst_58 = arith.constant dense<0.000000e+00> : vector<16x32xf32>
    %147 = tpu.matmul %144, %146, %cst_58 {dimension_numbers = #tpu.dot_dimension_numbers<[1], [0], [0], [1], [0, 0, 1, 1], [], []>} : vector<16x64xf32>, vector<64x32xf32>, vector<16x32xf32> -> vector<16x32xf32>
    %c0_59 = arith.constant 0 : index
    %c0_60 = arith.constant 0 : index
    %c0_61 = arith.constant 0 : index
    %148 = vector.load %arg15[%c0_59, %c0_60, %c0_61] : memref<2x1x32xf32, #tpu.memory_space<vmem>>, vector<1x1x32xf32>
    %149 = vector.shape_cast %148 : vector<1x1x32xf32> to vector<1x32xf32>
    %150 = vector.broadcast %149 : vector<1x32xf32> to vector<16x32xf32>
    %151 = arith.addf %147, %150 : vector<16x32xf32>
    %152 = arith.addf %151, %129 : vector<16x32xf32>
    %c0_62 = arith.constant 0 : index
    %c0_63 = arith.constant 0 : index
    %c0_64 = arith.constant 0 : index
    %153 = vector.load %arg16[%c0_62, %c0_63, %c0_64] : memref<2x1x32xf32, #tpu.memory_space<vmem>>, vector<1x1x32xf32>
    %154 = vector.shape_cast %153 : vector<1x1x32xf32> to vector<1x32xf32>
    %c0_65 = arith.constant 0 : index
    %c0_66 = arith.constant 0 : index
    %c0_67 = arith.constant 0 : index
    %155 = vector.load %arg17[%c0_65, %c0_66, %c0_67] : memref<2x1x32xf32, #tpu.memory_space<vmem>>, vector<1x1x32xf32>
    %156 = vector.shape_cast %155 : vector<1x1x32xf32> to vector<1x32xf32>
    %cst_68 = arith.constant dense<0.000000e+00> : vector<16xf32>
    %157 = vector.multi_reduction <add>, %152, %cst_68 [1] : vector<16x32xf32> to vector<16xf32>
    %158 = vector.shape_cast %157 : vector<16xf32> to vector<16x1xf32>
    %cst_69 = arith.constant 3.200000e+01 : f32
    %159 = vector.broadcast %cst_69 : f32 to vector<16x1xf32>
    %160 = arith.divf %158, %159 : vector<16x1xf32>
    %161 = vector.broadcast %160 : vector<16x1xf32> to vector<16x32xf32>
    %162 = arith.subf %152, %161 : vector<16x32xf32>
    %163 = arith.mulf %162, %162 : vector<16x32xf32>
    %cst_70 = arith.constant dense<0.000000e+00> : vector<16xf32>
    %164 = vector.multi_reduction <add>, %163, %cst_70 [1] : vector<16x32xf32> to vector<16xf32>
    %165 = vector.shape_cast %164 : vector<16xf32> to vector<16x1xf32>
    %cst_71 = arith.constant 3.200000e+01 : f32
    %166 = vector.broadcast %cst_71 : f32 to vector<16x1xf32>
    %167 = arith.divf %165, %166 : vector<16x1xf32>
    %168 = vector.broadcast %160 : vector<16x1xf32> to vector<16x32xf32>
    %169 = arith.subf %152, %168 : vector<16x32xf32>
    %cst_72 = arith.constant 9.99999996E-13 : f32
    %170 = vector.broadcast %cst_72 : f32 to vector<16x1xf32>
    %171 = arith.addf %167, %170 : vector<16x1xf32>
    %172 = math.rsqrt %171 : vector<16x1xf32>
    %173 = vector.broadcast %172 : vector<16x1xf32> to vector<16x32xf32>
    %174 = arith.mulf %169, %173 : vector<16x32xf32>
    %175 = vector.broadcast %154 : vector<1x32xf32> to vector<16x32xf32>
    %176 = arith.mulf %174, %175 : vector<16x32xf32>
    %177 = vector.broadcast %156 : vector<1x32xf32> to vector<16x32xf32>
    %178 = arith.addf %176, %177 : vector<16x32xf32>
    %c1 = arith.constant 1 : index
    %c0_73 = arith.constant 0 : index
    %c0_74 = arith.constant 0 : index
    %179 = vector.load %arg6[%c1, %c0_73, %c0_74] : memref<2x32x96xf32, #tpu.memory_space<vmem>>, vector<1x32x96xf32>
    %180 = vector.shape_cast %179 : vector<1x32x96xf32> to vector<32x96xf32>
    %cst_75 = arith.constant dense<0.000000e+00> : vector<16x96xf32>
    %181 = tpu.matmul %178, %180, %cst_75 {dimension_numbers = #tpu.dot_dimension_numbers<[1], [0], [0], [1], [0, 0, 1, 1], [], []>} : vector<16x32xf32>, vector<32x96xf32>, vector<16x96xf32> -> vector<16x96xf32>
    %c1_76 = arith.constant 1 : index
    %c0_77 = arith.constant 0 : index
    %c0_78 = arith.constant 0 : index
    %182 = vector.load %arg7[%c1_76, %c0_77, %c0_78] : memref<2x1x96xf32, #tpu.memory_space<vmem>>, vector<1x1x96xf32>
    %183 = vector.shape_cast %182 : vector<1x1x96xf32> to vector<1x96xf32>
    %184 = vector.broadcast %183 : vector<1x96xf32> to vector<16x96xf32>
    %185 = arith.addf %181, %184 : vector<16x96xf32>
    %186 = vector.shape_cast %185 : vector<16x96xf32> to vector<2x8x96xf32>
    %187 = vector.extract_strided_slice %186 {offsets = [0, 0, 0], sizes = [2, 8, 8], strides = [1, 1, 1]} : vector<2x8x96xf32> to vector<2x8x8xf32>
    %188 = vector.extract_strided_slice %186 {offsets = [0, 0, 8], sizes = [2, 8, 8], strides = [1, 1, 1]} : vector<2x8x96xf32> to vector<2x8x8xf32>
    %189 = vector.extract_strided_slice %186 {offsets = [0, 0, 16], sizes = [2, 8, 8], strides = [1, 1, 1]} : vector<2x8x96xf32> to vector<2x8x8xf32>
    %190 = vector.extract_strided_slice %186 {offsets = [0, 0, 24], sizes = [2, 8, 8], strides = [1, 1, 1]} : vector<2x8x96xf32> to vector<2x8x8xf32>
    %191 = vector.shape_cast %187 : vector<2x8x8xf32> to vector<1x2x8x8xf32>
    %192 = vector.shape_cast %188 : vector<2x8x8xf32> to vector<1x2x8x8xf32>
    %193 = vector.shape_cast %189 : vector<2x8x8xf32> to vector<1x2x8x8xf32>
    %194 = vector.shape_cast %190 : vector<2x8x8xf32> to vector<1x2x8x8xf32>
    %195 = tpu.concatenate %191, %192, %193, %194 in 0 : vector<1x2x8x8xf32>, vector<1x2x8x8xf32>, vector<1x2x8x8xf32>, vector<1x2x8x8xf32> -> vector<4x2x8x8xf32>
    %196 = vector.shape_cast %195 : vector<4x2x8x8xf32> to vector<8x8x8xf32>
    %197 = vector.extract_strided_slice %186 {offsets = [0, 0, 32], sizes = [2, 8, 8], strides = [1, 1, 1]} : vector<2x8x96xf32> to vector<2x8x8xf32>
    %198 = vector.extract_strided_slice %186 {offsets = [0, 0, 40], sizes = [2, 8, 8], strides = [1, 1, 1]} : vector<2x8x96xf32> to vector<2x8x8xf32>
    %199 = vector.extract_strided_slice %186 {offsets = [0, 0, 48], sizes = [2, 8, 8], strides = [1, 1, 1]} : vector<2x8x96xf32> to vector<2x8x8xf32>
    %200 = vector.extract_strided_slice %186 {offsets = [0, 0, 56], sizes = [2, 8, 8], strides = [1, 1, 1]} : vector<2x8x96xf32> to vector<2x8x8xf32>
    %201 = vector.shape_cast %197 : vector<2x8x8xf32> to vector<1x2x8x8xf32>
    %202 = vector.shape_cast %198 : vector<2x8x8xf32> to vector<1x2x8x8xf32>
    %203 = vector.shape_cast %199 : vector<2x8x8xf32> to vector<1x2x8x8xf32>
    %204 = vector.shape_cast %200 : vector<2x8x8xf32> to vector<1x2x8x8xf32>
    %205 = tpu.concatenate %201, %202, %203, %204 in 0 : vector<1x2x8x8xf32>, vector<1x2x8x8xf32>, vector<1x2x8x8xf32>, vector<1x2x8x8xf32> -> vector<4x2x8x8xf32>
    %206 = vector.shape_cast %205 : vector<4x2x8x8xf32> to vector<8x8x8xf32>
    %207 = vector.extract_strided_slice %186 {offsets = [0, 0, 64], sizes = [2, 8, 8], strides = [1, 1, 1]} : vector<2x8x96xf32> to vector<2x8x8xf32>
    %208 = vector.extract_strided_slice %186 {offsets = [0, 0, 72], sizes = [2, 8, 8], strides = [1, 1, 1]} : vector<2x8x96xf32> to vector<2x8x8xf32>
    %209 = vector.extract_strided_slice %186 {offsets = [0, 0, 80], sizes = [2, 8, 8], strides = [1, 1, 1]} : vector<2x8x96xf32> to vector<2x8x8xf32>
    %210 = vector.extract_strided_slice %186 {offsets = [0, 0, 88], sizes = [2, 8, 8], strides = [1, 1, 1]} : vector<2x8x96xf32> to vector<2x8x8xf32>
    %211 = vector.shape_cast %207 : vector<2x8x8xf32> to vector<1x2x8x8xf32>
    %212 = vector.shape_cast %208 : vector<2x8x8xf32> to vector<1x2x8x8xf32>
    %213 = vector.shape_cast %209 : vector<2x8x8xf32> to vector<1x2x8x8xf32>
    %214 = vector.shape_cast %210 : vector<2x8x8xf32> to vector<1x2x8x8xf32>
    %215 = tpu.concatenate %211, %212, %213, %214 in 0 : vector<1x2x8x8xf32>, vector<1x2x8x8xf32>, vector<1x2x8x8xf32>, vector<1x2x8x8xf32> -> vector<4x2x8x8xf32>
    %216 = vector.shape_cast %215 : vector<4x2x8x8xf32> to vector<8x8x8xf32>
    "tpu.trace_start"() <{level = 10 : i32, message = "bqd,bkd->bqk"}> : () -> ()
    %cst_79 = arith.constant dense<0.000000e+00> : vector<8x8x8xf32>
    %217 = tpu.matmul %196, %206, %cst_79 {dimension_numbers = #tpu.dot_dimension_numbers<[2], [2], [1], [1], [0, 0, 0, 1, 1, 1], [0], [0]>} : vector<8x8x8xf32>, vector<8x8x8xf32>, vector<8x8x8xf32> -> vector<8x8x8xf32>
    "tpu.trace_stop"() : () -> ()
    %cst_80 = arith.constant dense<0xFF800000> : vector<8x8xf32>
    %218 = vector.multi_reduction <maximumf>, %217, %cst_80 [2] : vector<8x8x8xf32> to vector<8x8xf32>
    %219 = vector.shape_cast %218 : vector<8x8xf32> to vector<8x8x1xf32>
    %220 = vector.broadcast %219 : vector<8x8x1xf32> to vector<8x8x8xf32>
    %221 = arith.subf %217, %220 : vector<8x8x8xf32>
    %222 = math.exp %221 : vector<8x8x8xf32>
    %cst_81 = arith.constant dense<0.000000e+00> : vector<8x8xf32>
    %223 = vector.multi_reduction <add>, %222, %cst_81 [2] : vector<8x8x8xf32> to vector<8x8xf32>
    %224 = vector.shape_cast %223 : vector<8x8xf32> to vector<8x8x1xf32>
    %225 = vector.broadcast %224 : vector<8x8x1xf32> to vector<8x8x8xf32>
    %226 = arith.divf %222, %225 : vector<8x8x8xf32>
    "tpu.trace_start"() <{level = 10 : i32, message = "bqk,bkd->bqd"}> : () -> ()
    %cst_82 = arith.constant dense<0.000000e+00> : vector<8x8x8xf32>
    %227 = tpu.matmul %226, %216, %cst_82 {dimension_numbers = #tpu.dot_dimension_numbers<[2], [1], [1], [2], [0, 0, 0, 1, 1, 2], [0], [0]>} : vector<8x8x8xf32>, vector<8x8x8xf32>, vector<8x8x8xf32> -> vector<8x8x8xf32>
    "tpu.trace_stop"() : () -> ()
    %228 = vector.shape_cast %227 : vector<8x8x8xf32> to vector<4x2x8x8xf32>
    %229 = vector.extract_strided_slice %228 {offsets = [0, 0, 0, 0], sizes = [1, 2, 8, 8], strides = [1, 1, 1, 1]} : vector<4x2x8x8xf32> to vector<1x2x8x8xf32>
    %230 = vector.shape_cast %229 : vector<1x2x8x8xf32> to vector<2x8x8xf32>
    %231 = vector.extract_strided_slice %228 {offsets = [1, 0, 0, 0], sizes = [1, 2, 8, 8], strides = [1, 1, 1, 1]} : vector<4x2x8x8xf32> to vector<1x2x8x8xf32>
    %232 = vector.shape_cast %231 : vector<1x2x8x8xf32> to vector<2x8x8xf32>
    %233 = vector.extract_strided_slice %228 {offsets = [2, 0, 0, 0], sizes = [1, 2, 8, 8], strides = [1, 1, 1, 1]} : vector<4x2x8x8xf32> to vector<1x2x8x8xf32>
    %234 = vector.shape_cast %233 : vector<1x2x8x8xf32> to vector<2x8x8xf32>
    %235 = vector.extract_strided_slice %228 {offsets = [3, 0, 0, 0], sizes = [1, 2, 8, 8], strides = [1, 1, 1, 1]} : vector<4x2x8x8xf32> to vector<1x2x8x8xf32>
    %236 = vector.shape_cast %235 : vector<1x2x8x8xf32> to vector<2x8x8xf32>
    %237 = tpu.concatenate %230, %232, %234, %236 in 2 : vector<2x8x8xf32>, vector<2x8x8xf32>, vector<2x8x8xf32>, vector<2x8x8xf32> -> vector<2x8x32xf32>
    %238 = vector.shape_cast %237 : vector<2x8x32xf32> to vector<16x32xf32>
    %c1_83 = arith.constant 1 : index
    %c0_84 = arith.constant 0 : index
    %c0_85 = arith.constant 0 : index
    %239 = vector.load %arg8[%c1_83, %c0_84, %c0_85] : memref<2x32x32xf32, #tpu.memory_space<vmem>>, vector<1x32x32xf32>
    %240 = vector.shape_cast %239 : vector<1x32x32xf32> to vector<32x32xf32>
    %cst_86 = arith.constant dense<0.000000e+00> : vector<16x32xf32>
    %241 = tpu.matmul %238, %240, %cst_86 {dimension_numbers = #tpu.dot_dimension_numbers<[1], [0], [0], [1], [0, 0, 1, 1], [], []>} : vector<16x32xf32>, vector<32x32xf32>, vector<16x32xf32> -> vector<16x32xf32>
    %c1_87 = arith.constant 1 : index
    %c0_88 = arith.constant 0 : index
    %c0_89 = arith.constant 0 : index
    %242 = vector.load %arg9[%c1_87, %c0_88, %c0_89] : memref<2x1x32xf32, #tpu.memory_space<vmem>>, vector<1x1x32xf32>
    %243 = vector.shape_cast %242 : vector<1x1x32xf32> to vector<1x32xf32>
    %244 = vector.broadcast %243 : vector<1x32xf32> to vector<16x32xf32>
    %245 = arith.addf %241, %244 : vector<16x32xf32>
    %246 = arith.addf %245, %178 : vector<16x32xf32>
    %c1_90 = arith.constant 1 : index
    %c0_91 = arith.constant 0 : index
    %c0_92 = arith.constant 0 : index
    %247 = vector.load %arg10[%c1_90, %c0_91, %c0_92] : memref<2x1x32xf32, #tpu.memory_space<vmem>>, vector<1x1x32xf32>
    %248 = vector.shape_cast %247 : vector<1x1x32xf32> to vector<1x32xf32>
    %c1_93 = arith.constant 1 : index
    %c0_94 = arith.constant 0 : index
    %c0_95 = arith.constant 0 : index
    %249 = vector.load %arg11[%c1_93, %c0_94, %c0_95] : memref<2x1x32xf32, #tpu.memory_space<vmem>>, vector<1x1x32xf32>
    %250 = vector.shape_cast %249 : vector<1x1x32xf32> to vector<1x32xf32>
    %cst_96 = arith.constant dense<0.000000e+00> : vector<16xf32>
    %251 = vector.multi_reduction <add>, %246, %cst_96 [1] : vector<16x32xf32> to vector<16xf32>
    %252 = vector.shape_cast %251 : vector<16xf32> to vector<16x1xf32>
    %cst_97 = arith.constant 3.200000e+01 : f32
    %253 = vector.broadcast %cst_97 : f32 to vector<16x1xf32>
    %254 = arith.divf %252, %253 : vector<16x1xf32>
    %255 = vector.broadcast %254 : vector<16x1xf32> to vector<16x32xf32>
    %256 = arith.subf %246, %255 : vector<16x32xf32>
    %257 = arith.mulf %256, %256 : vector<16x32xf32>
    %cst_98 = arith.constant dense<0.000000e+00> : vector<16xf32>
    %258 = vector.multi_reduction <add>, %257, %cst_98 [1] : vector<16x32xf32> to vector<16xf32>
    %259 = vector.shape_cast %258 : vector<16xf32> to vector<16x1xf32>
    %cst_99 = arith.constant 3.200000e+01 : f32
    %260 = vector.broadcast %cst_99 : f32 to vector<16x1xf32>
    %261 = arith.divf %259, %260 : vector<16x1xf32>
    %262 = vector.broadcast %254 : vector<16x1xf32> to vector<16x32xf32>
    %263 = arith.subf %246, %262 : vector<16x32xf32>
    %cst_100 = arith.constant 9.99999996E-13 : f32
    %264 = vector.broadcast %cst_100 : f32 to vector<16x1xf32>
    %265 = arith.addf %261, %264 : vector<16x1xf32>
    %266 = math.rsqrt %265 : vector<16x1xf32>
    %267 = vector.broadcast %266 : vector<16x1xf32> to vector<16x32xf32>
    %268 = arith.mulf %263, %267 : vector<16x32xf32>
    %269 = vector.broadcast %248 : vector<1x32xf32> to vector<16x32xf32>
    %270 = arith.mulf %268, %269 : vector<16x32xf32>
    %271 = vector.broadcast %250 : vector<1x32xf32> to vector<16x32xf32>
    %272 = arith.addf %270, %271 : vector<16x32xf32>
    %c1_101 = arith.constant 1 : index
    %c0_102 = arith.constant 0 : index
    %c0_103 = arith.constant 0 : index
    %273 = vector.load %arg12[%c1_101, %c0_102, %c0_103] : memref<2x32x64xf32, #tpu.memory_space<vmem>>, vector<1x32x64xf32>
    %274 = vector.shape_cast %273 : vector<1x32x64xf32> to vector<32x64xf32>
    %cst_104 = arith.constant dense<0.000000e+00> : vector<16x64xf32>
    %275 = tpu.matmul %272, %274, %cst_104 {dimension_numbers = #tpu.dot_dimension_numbers<[1], [0], [0], [1], [0, 0, 1, 1], [], []>} : vector<16x32xf32>, vector<32x64xf32>, vector<16x64xf32> -> vector<16x64xf32>
    %c1_105 = arith.constant 1 : index
    %c0_106 = arith.constant 0 : index
    %c0_107 = arith.constant 0 : index
    %276 = vector.load %arg13[%c1_105, %c0_106, %c0_107] : memref<2x1x64xf32, #tpu.memory_space<vmem>>, vector<1x1x64xf32>
    %277 = vector.shape_cast %276 : vector<1x1x64xf32> to vector<1x64xf32>
    %278 = vector.broadcast %277 : vector<1x64xf32> to vector<16x64xf32>
    %279 = arith.addf %275, %278 : vector<16x64xf32>
    %cst_108 = arith.constant 5.000000e-01 : f32
    %280 = vector.broadcast %cst_108 : f32 to vector<16x64xf32>
    %281 = arith.mulf %280, %279 : vector<16x64xf32>
    %cst_109 = arith.constant 1.41421354 : f32
    %282 = vector.broadcast %cst_109 : f32 to vector<16x64xf32>
    %283 = arith.divf %279, %282 : vector<16x64xf32>
    %284 = math.erf %283 : vector<16x64xf32>
    %cst_110 = arith.constant 1.000000e+00 : f32
    %285 = vector.broadcast %cst_110 : f32 to vector<16x64xf32>
    %286 = arith.addf %285, %284 : vector<16x64xf32>
    %287 = arith.mulf %281, %286 : vector<16x64xf32>
    %c1_111 = arith.constant 1 : index
    %c0_112 = arith.constant 0 : index
    %c0_113 = arith.constant 0 : index
    %288 = vector.load %arg14[%c1_111, %c0_112, %c0_113] : memref<2x64x32xf32, #tpu.memory_space<vmem>>, vector<1x64x32xf32>
    %289 = vector.shape_cast %288 : vector<1x64x32xf32> to vector<64x32xf32>
    %cst_114 = arith.constant dense<0.000000e+00> : vector<16x32xf32>
    %290 = tpu.matmul %287, %289, %cst_114 {dimension_numbers = #tpu.dot_dimension_numbers<[1], [0], [0], [1], [0, 0, 1, 1], [], []>} : vector<16x64xf32>, vector<64x32xf32>, vector<16x32xf32> -> vector<16x32xf32>
    %c1_115 = arith.constant 1 : index
    %c0_116 = arith.constant 0 : index
    %c0_117 = arith.constant 0 : index
    %291 = vector.load %arg15[%c1_115, %c0_116, %c0_117] : memref<2x1x32xf32, #tpu.memory_space<vmem>>, vector<1x1x32xf32>
    %292 = vector.shape_cast %291 : vector<1x1x32xf32> to vector<1x32xf32>
    %293 = vector.broadcast %292 : vector<1x32xf32> to vector<16x32xf32>
    %294 = arith.addf %290, %293 : vector<16x32xf32>
    %295 = arith.addf %294, %272 : vector<16x32xf32>
    %c1_118 = arith.constant 1 : index
    %c0_119 = arith.constant 0 : index
    %c0_120 = arith.constant 0 : index
    %296 = vector.load %arg16[%c1_118, %c0_119, %c0_120] : memref<2x1x32xf32, #tpu.memory_space<vmem>>, vector<1x1x32xf32>
    %297 = vector.shape_cast %296 : vector<1x1x32xf32> to vector<1x32xf32>
    %c1_121 = arith.constant 1 : index
    %c0_122 = arith.constant 0 : index
    %c0_123 = arith.constant 0 : index
    %298 = vector.load %arg17[%c1_121, %c0_122, %c0_123] : memref<2x1x32xf32, #tpu.memory_space<vmem>>, vector<1x1x32xf32>
    %299 = vector.shape_cast %298 : vector<1x1x32xf32> to vector<1x32xf32>
    %cst_124 = arith.constant dense<0.000000e+00> : vector<16xf32>
    %300 = vector.multi_reduction <add>, %295, %cst_124 [1] : vector<16x32xf32> to vector<16xf32>
    %301 = vector.shape_cast %300 : vector<16xf32> to vector<16x1xf32>
    %cst_125 = arith.constant 3.200000e+01 : f32
    %302 = vector.broadcast %cst_125 : f32 to vector<16x1xf32>
    %303 = arith.divf %301, %302 : vector<16x1xf32>
    %304 = vector.broadcast %303 : vector<16x1xf32> to vector<16x32xf32>
    %305 = arith.subf %295, %304 : vector<16x32xf32>
    %306 = arith.mulf %305, %305 : vector<16x32xf32>
    %cst_126 = arith.constant dense<0.000000e+00> : vector<16xf32>
    %307 = vector.multi_reduction <add>, %306, %cst_126 [1] : vector<16x32xf32> to vector<16xf32>
    %308 = vector.shape_cast %307 : vector<16xf32> to vector<16x1xf32>
    %cst_127 = arith.constant 3.200000e+01 : f32
    %309 = vector.broadcast %cst_127 : f32 to vector<16x1xf32>
    %310 = arith.divf %308, %309 : vector<16x1xf32>
    %311 = vector.broadcast %303 : vector<16x1xf32> to vector<16x32xf32>
    %312 = arith.subf %295, %311 : vector<16x32xf32>
    %cst_128 = arith.constant 9.99999996E-13 : f32
    %313 = vector.broadcast %cst_128 : f32 to vector<16x1xf32>
    %314 = arith.addf %310, %313 : vector<16x1xf32>
    %315 = math.rsqrt %314 : vector<16x1xf32>
    %316 = vector.broadcast %315 : vector<16x1xf32> to vector<16x32xf32>
    %317 = arith.mulf %312, %316 : vector<16x32xf32>
    %318 = vector.broadcast %297 : vector<1x32xf32> to vector<16x32xf32>
    %319 = arith.mulf %317, %318 : vector<16x32xf32>
    %320 = vector.broadcast %299 : vector<1x32xf32> to vector<16x32xf32>
    %321 = arith.addf %319, %320 : vector<16x32xf32>
    %c0_129 = arith.constant 0 : index
    %c0_130 = arith.constant 0 : index
    %322 = vector.load %arg18[%c0_129, %c0_130] : memref<32x128xf32, #tpu.memory_space<vmem>>, vector<32x128xf32>
    %cst_131 = arith.constant dense<0.000000e+00> : vector<16x128xf32>
    %323 = tpu.matmul %321, %322, %cst_131 {dimension_numbers = #tpu.dot_dimension_numbers<[1], [0], [0], [1], [0, 0, 1, 1], [], []>} : vector<16x32xf32>, vector<32x128xf32>, vector<16x128xf32> -> vector<16x128xf32>
    %c0_132 = arith.constant 0 : index
    %c0_133 = arith.constant 0 : index
    %324 = vector.load %arg19[%c0_132, %c0_133] : memref<1x128xf32, #tpu.memory_space<vmem>>, vector<1x128xf32>
    %325 = vector.broadcast %324 : vector<1x128xf32> to vector<16x128xf32>
    %326 = arith.addf %323, %325 : vector<16x128xf32>
    %c0_134 = arith.constant 0 : index
    %c0_135 = arith.constant 0 : index
    %327 = vector.load %arg20[%c0_134, %c0_135] : memref<16x128xf32, #tpu.memory_space<vmem>>, vector<16x128xf32>
    tpu.vector_store %arg20[%c0_134, %c0_135], %326 {strides = array<i32>} : memref<16x128xf32, #tpu.memory_space<vmem>>, vector<16x128xf32>,
    return
  }
}

</mosaic_0001>

<llo_original>
// kernel: csibert_forward.1
$region0: #{csibert_forward.1}
  #allocation0 [shape = 'u32[]', space=smem, size = 0x4, offset = 0x4, fixed_abs, tag = 'smem constant byte address 0x4 - core index']
  #allocation1 [shape = 'u32[72,128]{1,0:T(1,128)}', space=vmem, size = 0x9000, scoped, tag = 'internal scratch']
  %s0 = inlined_call_operand.vmem [shape: f32[16,16], index: 0, kind: input, shape index: {}]
  %s1 = inlined_call_operand.hbm [shape: f32[16,32], index: 1, kind: input, shape index: {}]
  %s2 = inlined_call_operand.vmem [shape: f32[1,32], index: 2, kind: input, shape index: {}]
  %s3 = inlined_call_operand.vmem [shape: f32[8,32], index: 3, kind: input, shape index: {}]
  %s4 = inlined_call_operand.hbm [shape: f32[1,32], index: 4, kind: input, shape index: {}]
  %s5 = inlined_call_operand.hbm [shape: f32[1,32], index: 5, kind: input, shape index: {}]
  %s6 = inlined_call_operand.vmem [shape: f32[2,32,96], index: 6, kind: input, shape index: {}]
  %s7 = inlined_call_operand.vmem [shape: f32[2,1,96], index: 7, kind: input, shape index: {}]
  %s8 = inlined_call_operand.vmem [shape: f32[2,32,32], index: 8, kind: input, shape index: {}]
  %s9 = inlined_call_operand.vmem [shape: f32[2,1,32], index: 9, kind: input, shape index: {}]
  %s10 = inlined_call_operand.vmem [shape: f32[2,1,32], index: 10, kind: input, shape index: {}]
  %s11 = inlined_call_operand.vmem [shape: f32[2,1,32], index: 11, kind: input, shape index: {}]
  %s12 = inlined_call_operand.vmem [shape: f32[2,32,64], index: 12, kind: input, shape index: {}]
  %s13 = inlined_call_operand.vmem [shape: f32[2,1,64], index: 13, kind: input, shape index: {}]
  %s14 = inlined_call_operand.vmem [shape: f32[2,64,32], index: 14, kind: input, shape index: {}]
  %s15 = inlined_call_operand.vmem [shape: f32[2,1,32], index: 15, kind: input, shape index: {}]
  %s16 = inlined_call_operand.vmem [shape: f32[2,1,32], index: 16, kind: input, shape index: {}]
  %s17 = inlined_call_operand.hbm [shape: f32[2,1,32], index: 17, kind: input, shape index: {}]
  %s18 = inlined_call_operand.vmem [shape: f32[32,128], index: 18, kind: input, shape index: {}]
  %s19 = inlined_call_operand.hbm [shape: f32[1,128], index: 19, kind: input, shape index: {}]
  %s20 = inlined_call_operand.vmem [shape: f32[16,128], index: 20, kind: output, shape index: {}]
  %s21 = sld [smem:[#allocation0]]
  $region110: #{csibert_forward.1} parent=0
    _
  %s23 = ssub.s32 1, %s21
  %s24 = scalar_select 0, %s23, %s21
  $region1: #{csibert_forward.1} parent=0
    #allocation2 [shape = 'u8[8192]{0}', space=vmem, size = 0x2000, scoped, tag = 'input window, operand 1, single buffered']
    #allocation3 [shape = 's32[1]{0}', space=sflag, size = 0x4, scoped, tag = 'scoped memory for csibert_forward.1']
    #allocation4 [shape = 'u8[512]{0}', space=vmem, size = 0x400, scoped, tag = 'input window, operand 4, single buffered']
    #allocation5 [shape = 's32[1]{0}', space=sflag, size = 0x4, scoped, tag = 'scoped memory for csibert_forward.1']
    #allocation6 [shape = 'u8[512]{0}', space=vmem, size = 0x400, scoped, tag = 'input window, operand 5, single buffered']
    #allocation7 [shape = 'u8[1024]{0}', space=vmem, size = 0x400, scoped, tag = 'input window, operand 17, single buffered']
    #allocation8 [shape = 's32[1]{0}', space=sflag, size = 0x4, scoped, tag = 'scoped memory for csibert_forward.1']
    #allocation9 [shape = 'u8[512]{0}', space=vmem, size = 0x400, scoped, tag = 'input window, operand 19, single buffered']
    %25 = vsyncpa [#allocation3], 0
    %26 = vsyncpa [#allocation5], 0
    %27 = vsyncpa [#allocation8], 0
    // Predicated region
    $region2: #{csibert_forward.1} parent=1 // pred_check
      _
    $region3: #{csibert_forward.1} parent=1 // pred_check_branch
      %29 = sbr.rel (0) target = $region5
    $region4: #{csibert_forward.1} parent=1 // pred_region
      _
    $region5: #{csibert_forward.1} parent=1 // pred_fallthru
      _
    // Predicated region
    $region6: #{csibert_forward.1} parent=1 // pred_check
      _
    $region7: #{csibert_forward.1} parent=1 // pred_check_branch
      %31 = sbr.rel (0) target = $region9
    $region8: #{csibert_forward.1} parent=1 // pred_region
      %33 = vsyncadd [#allocation3], 0
      %s34 = sshll.u32 %s1, 4
      %s35 = int_to_ptr.hbm [resolvable:$true] %s34
      %s36 = sshll.u32 [#allocation2], 4
      %s37 = int_to_ptr.vmem [resolvable:$true] %s36
      %42 = dma.hbm_to_vmem [thread:$0]  %s35, 256, %s37, [#allocation3], 128, 128, 8
    $region9: #{csibert_forward.1} parent=1 // pred_fallthru
      _
    // Predicated region
    $region10: #{csibert_forward.1} parent=1 // pred_check
      _
    $region11: #{csibert_forward.1} parent=1 // pred_check_branch
      %44 = sbr.rel (0) target = $region13
    $region12: #{csibert_forward.1} parent=1 // pred_region
      _
    $region13: #{csibert_forward.1} parent=1 // pred_fallthru
      _
    // Predicated region
    $region14: #{csibert_forward.1} parent=1 // pred_check
      _
    $region15: #{csibert_forward.1} parent=1 // pred_check_branch
      %46 = sbr.rel (0) target = $region17
    $region16: #{csibert_forward.1} parent=1 // pred_region
      _
    $region17: #{csibert_forward.1} parent=1 // pred_fallthru
      _
    // Predicated region
    $region18: #{csibert_forward.1} parent=1 // pred_check
      _
    $region19: #{csibert_forward.1} parent=1 // pred_check_branch
      %48 = sbr.rel (0) target = $region21
    $region20: #{csibert_forward.1} parent=1 // pred_region
      %50 = vsyncadd [#allocation5], 0
      %s52 = sshll.u32 %s4, 4
      %s53 = int_to_ptr.hbm [resolvable:$true] %s52
      %s54 = sshll.u32 [#allocation4], 4
      %s55 = int_to_ptr.vmem [resolvable:$true] %s54
      %57 = dma.hbm_to_vmem [thread:$0]  %s53, 16, %s55, [#allocation5]
    $region21: #{csibert_forward.1} parent=1 // pred_fallthru
      _
    // Predicated region
    $region22: #{csibert_forward.1} parent=1 // pred_check
      _
    $region23: #{csibert_forward.1} parent=1 // pred_check_branch
      %59 = sbr.rel (0) target = $region25
    $region24: #{csibert_forward.1} parent=1 // pred_region
      %61 = vsyncadd [#allocation5], 0
      %s63 = sshll.u32 %s5, 4
      %s64 = int_to_ptr.hbm [resolvable:$true] %s63
      %s65 = sshll.u32 [#allocation6], 4
      %s66 = int_to_ptr.vmem [resolvable:$true] %s65
      %68 = dma.hbm_to_vmem [thread:$0]  %s64, 16, %s66, [#allocation5]
    $region25: #{csibert_forward.1} parent=1 // pred_fallthru
      _
    // Predicated region
    $region26: #{csibert_forward.1} parent=1 // pred_check
      _
    $region27: #{csibert_forward.1} parent=1 // pred_check_branch
      %70 = sbr.rel (0) target = $region29
    $region28: #{csibert_forward.1} parent=1 // pred_region
      _
    $region29: #{csibert_forward.1} parent=1 // pred_fallthru
      _
    // Predicated region
    $region30: #{csibert_forward.1} parent=1 // pred_check
      _
    $region31: #{csibert_forward.1} parent=1 // pred_check_branch
      %72 = sbr.rel (0) target = $region33
    $region32: #{csibert_forward.1} parent=1 // pred_region
      _
    $region33: #{csibert_forward.1} parent=1 // pred_fallthru
      _
    // Predicated region
    $region34: #{csibert_forward.1} parent=1 // pred_check
      _
    $region35: #{csibert_forward.1} parent=1 // pred_check_branch
      %74 = sbr.rel (0) target = $region37
    $region36: #{csibert_forward.1} parent=1 // pred_region
      _
    $region37: #{csibert_forward.1} parent=1 // pred_fallthru
      _
    // Predicated region
    $region38: #{csibert_forward.1} parent=1 // pred_check
      _
    $region39: #{csibert_forward.1} parent=1 // pred_check_branch
      %76 = sbr.rel (0) target = $region41
    $region40: #{csibert_forward.1} parent=1 // pred_region
      _
    $region41: #{csibert_forward.1} parent=1 // pred_fallthru
      _
    // Predicated region
    $region42: #{csibert_forward.1} parent=1 // pred_check
      _
    $region43: #{csibert_forward.1} parent=1 // pred_check_branch
      %78 = sbr.rel (0) target = $region45
    $region44: #{csibert_forward.1} parent=1 // pred_region
      _
    $region45: #{csibert_forward.1} parent=1 // pred_fallthru
      _
    // Predicated region
    $region46: #{csibert_forward.1} parent=1 // pred_check
      _
    $region47: #{csibert_forward.1} parent=1 // pred_check_branch
      %80 = sbr.rel (0) target = $region49
    $region48: #{csibert_forward.1} parent=1 // pred_region
      _
    $region49: #{csibert_forward.1} parent=1 // pred_fallthru
      _
    // Predicated region
    $region50: #{csibert_forward.1} parent=1 // pred_check
      _
    $region51: #{csibert_forward.1} parent=1 // pred_check_branch
      %82 = sbr.rel (0) target = $region53
    $region52: #{csibert_forward.1} parent=1 // pred_region
      _
    $region53: #{csibert_forward.1} parent=1 // pred_fallthru
      _
    // Predicated region
    $region54: #{csibert_forward.1} parent=1 // pred_check
      _
    $region55: #{csibert_forward.1} parent=1 // pred_check_branch
      %84 = sbr.rel (0) target = $region57
    $region56: #{csibert_forward.1} parent=1 // pred_region
      _
    $region57: #{csibert_forward.1} parent=1 // pred_fallthru
      _
    // Predicated region
    $region58: #{csibert_forward.1} parent=1 // pred_check
      _
    $region59: #{csibert_forward.1} parent=1 // pred_check_branch
      %86 = sbr.rel (0) target = $region61
    $region60: #{csibert_forward.1} parent=1 // pred_region
      _
    $region61: #{csibert_forward.1} parent=1 // pred_fallthru
      _
    // Predicated region
    $region62: #{csibert_forward.1} parent=1 // pred_check
      _
    $region63: #{csibert_forward.1} parent=1 // pred_check_branch
      %88 = sbr.rel (0) target = $region65
    $region64: #{csibert_forward.1} parent=1 // pred_region
      _
    $region65: #{csibert_forward.1} parent=1 // pred_fallthru
      _
    // Predicated region
    $region66: #{csibert_forward.1} parent=1 // pred_check
      _
    $region67: #{csibert_forward.1} parent=1 // pred_check_branch
      %90 = sbr.rel (0) target = $region69
    $region68: #{csibert_forward.1} parent=1 // pred_region
      _
    $region69: #{csibert_forward.1} parent=1 // pred_fallthru
      _
    // Predicated region
    $region70: #{csibert_forward.1} parent=1 // pred_check
      _
    $region71: #{csibert_forward.1} parent=1 // pred_check_branch
      %92 = sbr.rel (0) target = $region73
    $region72: #{csibert_forward.1} parent=1 // pred_region
      %94 = vsyncadd [#allocation8], 0
      %s95 = sshll.u32 %s17, 4
      %s96 = int_to_ptr.hbm [resolvable:$true] %s95
      %s97 = sshll.u32 [#allocation7], 4
      %s98 = int_to_ptr.vmem [resolvable:$true] %s97
      %103 = dma.hbm_to_vmem [thread:$0]  %s96, 32, %s98, [#allocation8], 16, 16, 1
    $region73: #{csibert_forward.1} parent=1 // pred_fallthru
      _
    // Predicated region
    $region74: #{csibert_forward.1} parent=1 // pred_check
      _
    $region75: #{csibert_forward.1} parent=1 // pred_check_branch
      %105 = sbr.rel (0) target = $region77
    $region76: #{csibert_forward.1} parent=1 // pred_region
      _
    $region77: #{csibert_forward.1} parent=1 // pred_fallthru
      _
    // Predicated region
    $region78: #{csibert_forward.1} parent=1 // pred_check
      _
    $region79: #{csibert_forward.1} parent=1 // pred_check_branch
      %107 = sbr.rel (0) target = $region81
    $region80: #{csibert_forward.1} parent=1 // pred_region
      %109 = vsyncadd [#allocation8], 0
      %s111 = sshll.u32 %s19, 4
      %s112 = int_to_ptr.hbm [resolvable:$true] %s111
      %s113 = sshll.u32 [#allocation9], 4
      %s114 = int_to_ptr.vmem [resolvable:$true] %s113
      %116 = dma.hbm_to_vmem [thread:$0]  %s112, 16, %s114, [#allocation8]
    $region81: #{csibert_forward.1} parent=1 // pred_fallthru
      _
    // Predicated region
    $region82: #{csibert_forward.1} parent=1 // pred_check
      _
    $region83: #{csibert_forward.1} parent=1 // pred_check_branch
      %118 = sbr.rel (0) target = $region85
    $region84: #{csibert_forward.1} parent=1 // pred_region
      %120 = dma.done [#allocation3], 256
    $region85: #{csibert_forward.1} parent=1 // pred_fallthru
      _
    // Predicated region
    $region86: #{csibert_forward.1} parent=1 // pred_check
      _
    $region87: #{csibert_forward.1} parent=1 // pred_check_branch
      %122 = sbr.rel (0) target = $region89
    $region88: #{csibert_forward.1} parent=1 // pred_region
      %124 = dma.done [#allocation5], 16
    $region89: #{csibert_forward.1} parent=1 // pred_fallthru
      _
    // Predicated region
    $region90: #{csibert_forward.1} parent=1 // pred_check
      _
    $region91: #{csibert_forward.1} parent=1 // pred_check_branch
      %126 = sbr.rel (0) target = $region93
    $region92: #{csibert_forward.1} parent=1 // pred_region
      %128 = dma.done [#allocation5], 16
    $region93: #{csibert_forward.1} parent=1 // pred_fallthru
      _
    // Predicated region
    $region94: #{csibert_forward.1} parent=1 // pred_check
      _
    $region95: #{csibert_forward.1} parent=1 // pred_check_branch
      %130 = sbr.rel (0) target = $region97
    $region96: #{csibert_forward.1} parent=1 // pred_region
      %132 = dma.done [#allocation8], 32
    $region97: #{csibert_forward.1} parent=1 // pred_fallthru
      _
    // Predicated region
    $region98: #{csibert_forward.1} parent=1 // pred_check
      _
    $region99: #{csibert_forward.1} parent=1 // pred_check_branch
      %134 = sbr.rel (0) target = $region101
    $region100: #{csibert_forward.1} parent=1 // pred_region
      %136 = dma.done [#allocation8], 16
    $region101: #{csibert_forward.1} parent=1 // pred_fallthru
      _
    %v137 = vld [vmem:[%s0] sm:$0xff]
    %v138 = vld [vmem:[%s0 + $0x8] sm:$0xff]
    %v139 = vld [vmem:[#allocation2] sm:$0xff]
    %v140 = vld [vmem:[#allocation2 + $0x8] sm:$0xff]
    %v141 = vld [vmem:[%s2] sm:$0x1]
    %v143 = vperm.slane %v141, 0
    %vm145 = vcmask 130048
    %v147 = vsel %vm145, %v137, 0
    %v150 = vsel %vm145, %v138, 0
    %152 = vmatpush.msra.mxu0 0.0
    %153 = vmatpush.msra.mxu0 0.0
    %154 = vmatpush.msra.mxu0 0.0
    %155 = vmatpush.msra.mxu0 0.0
    %156 = vmatpush.msra.mxu0 0.0
    %157 = vmatpush.msra.mxu0 0.0
    %158 = vmatpush.msra.mxu0 0.0
    %159 = vmatpush.msra.mxu0 0.0
    %160 = vmatpush.msra.mxu0 0.0
    %161 = vmatpush.msra.mxu0 0.0
    %162 = vmatpush.msra.mxu0 0.0
    %163 = vmatpush.msra.mxu0 0.0
    %164 = vmatpush.msra.mxu0 0.0
    %165 = vmatpush.msra.mxu0 0.0
    %166 = vmatpush.msra.mxu0 %v140
    %167 = vmatpush.msra.mxu0 %v139
    %168 = vmatmul.f32.gmra.mxu0 %v147
    %v169 = vpop.f32.mrf.mxu0
    %v170 = vadd.f32 %v143, %v169
    %171 = vmatmul.f32.gmra.mxu0 %v150
    %v172 = vpop.f32.mrf.mxu0
    %v173 = vadd.f32 %v143, %v172
    %174 = vdwg.mxu0
    %v175 = vld [vmem:[%s3] sm:$0xff]
    %v176 = vadd.f32 %v170, %v175
    %v177 = vadd.f32 %v173, %v175
    %v178 = vld [vmem:[#allocation4] sm:$0x1]
    %v179 = vld [vmem:[#allocation6] sm:$0x1]
    %vm180 = vcmask 261120
    %v181 = vsel %vm180, %v176, 0.0
    %182 = vadd.xlane.f32.xlu0 %v181
    %v183 = vpop.xlane.xlu0 %182
    %v184 = vsel %vm180, %v177, 0.0
    %185 = vadd.xlane.f32.xlu0 %v184
    %v186 = vpop.xlane.xlu0 %185
    %v187 = vrcp.pop 32.0
    %v188 = vmul.f32 32.0, %v187
    %v189 = vsub.f32 1.0, %v188
    %v190 = vmul.f32 %v187, %v189
    %v191 = vadd.f32 %v187, %v190
    %vm192 = vweird.f32 %v187
    %v193 = vsel %vm192, %v187, %v191
    %v194 = vmul.f32 %v183, %v193
    %v195 = vmul.f32 %v186, %v193
    %v196 = vsub.f32 %v176, %v194
    %v197 = vsub.f32 %v177, %v195
    %v198 = vmul.f32 %v196, %v196
    %v199 = vmul.f32 %v197, %v197
    %v200 = vsel %vm180, %v198, 0.0
    %201 = vadd.xlane.f32.xlu0 %v200
    %v202 = vpop.xlane.xlu0 %201
    %v203 = vsel %vm180, %v199, 0.0
    %204 = vadd.xlane.f32.xlu0 %v203
    %v205 = vpop.xlane.xlu0 %204
    %v206 = vmul.f32 %v202, %v193
    %v207 = vmul.f32 %v205, %v193
    %v208 = vadd.f32 %v206, 1e-12
    %v209 = vadd.f32 %v207, 1e-12
    %v210 = vrsqrt.pop %v208
    %v211 = vmul.f32 %v210, %v208
    %v212 = vmul.f32 %v211, %v210
    %v213 = vmul.f32 0.5, %v212
    %v214 = vsub.f32 1.5, %v213
    %v215 = vmul.f32 %v210, %v214
    %vm216 = vweird.f32 %v208
    %vm217 = vweird.f32 %v210
    %vm218 = vmor %vm216, %vm217
    %v219 = vsel %vm218, %v210, %v215
    %v220 = vrsqrt.pop %v209
    %v221 = vmul.f32 %v220, %v209
    %v222 = vmul.f32 %v221, %v220
    %v223 = vmul.f32 0.5, %v222
    %v224 = vsub.f32 1.5, %v223
    %v225 = vmul.f32 %v220, %v224
    %vm226 = vweird.f32 %v209
    %vm227 = vweird.f32 %v220
    %vm228 = vmor %vm226, %vm227
    %v229 = vsel %vm228, %v220, %v225
    %v230 = vmul.f32 %v196, %v219
    %v231 = vmul.f32 %v197, %v229
    %v233 = vperm.slane %v178, 0
    %v235 = vmul.f32 %v230, %v233
    %v236 = vmul.f32 %v231, %v233
    %v238 = vperm.slane %v179, 0
    %v240 = vadd.f32 %v235, %v238
    %v241 = vadd.f32 %v236, %v238
    %v242 = vld [vmem:[%s6] sm:$0xff]
    %v243 = vld [vmem:[%s6 + $0x8] sm:$0xff]
    %v244 = vld [vmem:[%s6 + $0x10] sm:$0xff]
    %v245 = vld [vmem:[%s6 + $0x18] sm:$0xff]
    %v246 = vld [vmem:[%s7] sm:$0x1]
    %v248 = vperm.slane %v246, 0
    %v251 = vsel %vm180, %v240, 0
    %v254 = vsel %vm180, %v241, 0
    %256 = vmatpush.msra.mxu0 0.0
    %257 = vmatpush.msra.mxu0 0.0
    %258 = vmatpush.msra.mxu0 0.0
    %259 = vmatpush.msra.mxu0 0.0
    %260 = vmatpush.msra.mxu0 0.0
    %261 = vmatpush.msra.mxu0 0.0
    %262 = vmatpush.msra.mxu0 0.0
    %263 = vmatpush.msra.mxu0 0.0
    %264 = vmatpush.msra.mxu0 0.0
    %265 = vmatpush.msra.mxu0 0.0
    %266 = vmatpush.msra.mxu0 0.0
    %267 = vmatpush.msra.mxu0 0.0
    %268 = vmatpush.msra.mxu0 %v245
    %269 = vmatpush.msra.mxu0 %v244
    %270 = vmatpush.msra.mxu0 %v243
    %271 = vmatpush.msra.mxu0 %v242
    %272 = vmatmul.f32.gmra.mxu0 %v251
    %v273 = vpop.f32.mrf.mxu0
    %v274 = vadd.f32 %v248, %v273
    %275 = vmatmul.f32.gmra.mxu0 %v254
    %v276 = vpop.f32.mrf.mxu0
    %v277 = vadd.f32 %v248, %v276
    %278 = vdwg.mxu0
    %281 = vrot.lane.b32.xlu0 %v274, 120
    %v282 = vpop.permute.xlu0 %281
    %283 = vrot.lane.b32.xlu0 %v277, 120
    %v284 = vpop.permute.xlu0 %283
    %285 = vrot.lane.b32.xlu0 %v274, 112
    %v286 = vpop.permute.xlu0 %285
    %287 = vrot.lane.b32.xlu0 %v277, 112
    %v288 = vpop.permute.xlu0 %287
    %289 = vrot.lane.b32.xlu0 %v274, 104
    %v290 = vpop.permute.xlu0 %289
    %291 = vrot.lane.b32.xlu0 %v277, 104
    %v292 = vpop.permute.xlu0 %291
    %293 = vrot.lane.b32.xlu0 %v274, 96
    %v294 = vpop.permute.xlu0 %293
    %vm295 = vcmask 64512
    %v296 = vsel %vm295, %v274, 0
    %v298 = vsel %vm295, %v294, 0
    %300 = vmatpush.xpose.msra.mxu0 0.0
    %301 = vmatpush.xpose.msra.mxu0 0.0
    %302 = vmatpush.xpose.msra.mxu0 0.0
    %303 = vmatpush.xpose.msra.mxu0 0.0
    %304 = vmatpush.xpose.msra.mxu0 0.0
    %305 = vmatpush.xpose.msra.mxu0 0.0
    %306 = vmatpush.xpose.msra.mxu0 0.0
    %307 = vmatpush.xpose.msra.mxu0 0.0
    %308 = vmatpush.xpose.msra.mxu0 0.0
    %309 = vmatpush.xpose.msra.mxu0 0.0
    %310 = vmatpush.xpose.msra.mxu0 0.0
    %311 = vmatpush.xpose.msra.mxu0 0.0
    %312 = vmatpush.xpose.msra.mxu0 0.0
    %313 = vmatpush.xpose.msra.mxu0 0.0
    %314 = vmatpush.xpose.msra.mxu0 0.0
    %315 = vmatpush.xpose.msra.mxu0 %v298
    %316 = vmatmul.f32.gmra.mxu0 %v296
    %v317 = vpop.f32.mrf.mxu0
    %v318 = vadd.f32 0.0, %v317
    %319 = vdwg.mxu0
    %320 = vrot.lane.b32.xlu0 %v277, 96
    %v321 = vpop.permute.xlu0 %320
    %v322 = vsel %vm295, %v277, 0
    %v324 = vsel %vm295, %v321, 0
    %326 = vmatpush.xpose.msra.mxu0 0.0
    %327 = vmatpush.xpose.msra.mxu0 0.0
    %328 = vmatpush.xpose.msra.mxu0 0.0
    %329 = vmatpush.xpose.msra.mxu0 0.0
    %330 = vmatpush.xpose.msra.mxu0 0.0
    %331 = vmatpush.xpose.msra.mxu0 0.0
    %332 = vmatpush.xpose.msra.mxu0 0.0
    %333 = vmatpush.xpose.msra.mxu0 0.0
    %334 = vmatpush.xpose.msra.mxu0 0.0
    %335 = vmatpush.xpose.msra.mxu0 0.0
    %336 = vmatpush.xpose.msra.mxu0 0.0
    %337 = vmatpush.xpose.msra.mxu0 0.0
    %338 = vmatpush.xpose.msra.mxu0 0.0
    %339 = vmatpush.xpose.msra.mxu0 0.0
    %340 = vmatpush.xpose.msra.mxu0 0.0
    %341 = vmatpush.xpose.msra.mxu0 %v324
    %342 = vmatmul.f32.gmra.mxu0 %v322
    %v343 = vpop.f32.mrf.mxu0
    %v344 = vadd.f32 0.0, %v343
    %345 = vdwg.mxu0
    %346 = vrot.lane.b32.xlu0 %v282, 96
    %v347 = vpop.permute.xlu0 %346
    %v348 = vsel %vm295, %v282, 0
    %v350 = vsel %vm295, %v347, 0
    %352 = vmatpush.xpose.msra.mxu0 0.0
    %353 = vmatpush.xpose.msra.mxu0 0.0
    %354 = vmatpush.xpose.msra.mxu0 0.0
    %355 = vmatpush.xpose.msra.mxu0 0.0
    %356 = vmatpush.xpose.msra.mxu0 0.0
    %357 = vmatpush.xpose.msra.mxu0 0.0
    %358 = vmatpush.xpose.msra.mxu0 0.0
    %359 = vmatpush.xpose.msra.mxu0 0.0
    %360 = vmatpush.xpose.msra.mxu0 0.0
    %361 = vmatpush.xpose.msra.mxu0 0.0
    %362 = vmatpush.xpose.msra.mxu0 0.0
    %363 = vmatpush.xpose.msra.mxu0 0.0
    %364 = vmatpush.xpose.msra.mxu0 0.0
    %365 = vmatpush.xpose.msra.mxu0 0.0
    %366 = vmatpush.xpose.msra.mxu0 0.0
    %367 = vmatpush.xpose.msra.mxu0 %v350
    %368 = vmatmul.f32.gmra.mxu0 %v348
    %v369 = vpop.f32.mrf.mxu0
    %v370 = vadd.f32 0.0, %v369
    %371 = vdwg.mxu0
    %372 = vrot.lane.b32.xlu0 %v284, 96
    %v373 = vpop.permute.xlu0 %372
    %v374 = vsel %vm295, %v284, 0
    %v376 = vsel %vm295, %v373, 0
    %378 = vmatpush.xpose.msra.mxu0 0.0
    %379 = vmatpush.xpose.msra.mxu0 0.0
    %380 = vmatpush.xpose.msra.mxu0 0.0
    %381 = vmatpush.xpose.msra.mxu0 0.0
    %382 = vmatpush.xpose.msra.mxu0 0.0
    %383 = vmatpush.xpose.msra.mxu0 0.0
    %384 = vmatpush.xpose.msra.mxu0 0.0
    %385 = vmatpush.xpose.msra.mxu0 0.0
    %386 = vmatpush.xpose.msra.mxu0 0.0
    %387 = vmatpush.xpose.msra.mxu0 0.0
    %388 = vmatpush.xpose.msra.mxu0 0.0
    %389 = vmatpush.xpose.msra.mxu0 0.0
    %390 = vmatpush.xpose.msra.mxu0 0.0
    %391 = vmatpush.xpose.msra.mxu0 0.0
    %392 = vmatpush.xpose.msra.mxu0 0.0
    %393 = vmatpush.xpose.msra.mxu0 %v376
    %394 = vmatmul.f32.gmra.mxu0 %v374
    %v395 = vpop.f32.mrf.mxu0
    %v396 = vadd.f32 0.0, %v395
    %397 = vdwg.mxu0
    %398 = vrot.lane.b32.xlu0 %v286, 96
    %v399 = vpop.permute.xlu0 %398
    %v400 = vsel %vm295, %v286, 0
    %v402 = vsel %vm295, %v399, 0
    %404 = vmatpush.xpose.msra.mxu0 0.0
    %405 = vmatpush.xpose.msra.mxu0 0.0
    %406 = vmatpush.xpose.msra.mxu0 0.0
    %407 = vmatpush.xpose.msra.mxu0 0.0
    %408 = vmatpush.xpose.msra.mxu0 0.0
    %409 = vmatpush.xpose.msra.mxu0 0.0
    %410 = vmatpush.xpose.msra.mxu0 0.0
    %411 = vmatpush.xpose.msra.mxu0 0.0
    %412 = vmatpush.xpose.msra.mxu0 0.0
    %413 = vmatpush.xpose.msra.mxu0 0.0
    %414 = vmatpush.xpose.msra.mxu0 0.0
    %415 = vmatpush.xpose.msra.mxu0 0.0
    %416 = vmatpush.xpose.msra.mxu0 0.0
    %417 = vmatpush.xpose.msra.mxu0 0.0
    %418 = vmatpush.xpose.msra.mxu0 0.0
    %419 = vmatpush.xpose.msra.mxu0 %v402
    %420 = vmatmul.f32.gmra.mxu0 %v400
    %v421 = vpop.f32.mrf.mxu0
    %v422 = vadd.f32 0.0, %v421
    %423 = vdwg.mxu0
    %424 = vrot.lane.b32.xlu0 %v288, 96
    %v425 = vpop.permute.xlu0 %424
    %v426 = vsel %vm295, %v288, 0
    %v428 = vsel %vm295, %v425, 0
    %430 = vmatpush.xpose.msra.mxu0 0.0
    %431 = vmatpush.xpose.msra.mxu0 0.0
    %432 = vmatpush.xpose.msra.mxu0 0.0
    %433 = vmatpush.xpose.msra.mxu0 0.0
    %434 = vmatpush.xpose.msra.mxu0 0.0
    %435 = vmatpush.xpose.msra.mxu0 0.0
    %436 = vmatpush.xpose.msra.mxu0 0.0
    %437 = vmatpush.xpose.msra.mxu0 0.0
    %438 = vmatpush.xpose.msra.mxu0 0.0
    %439 = vmatpush.xpose.msra.mxu0 0.0
    %440 = vmatpush.xpose.msra.mxu0 0.0
    %441 = vmatpush.xpose.msra.mxu0 0.0
    %442 = vmatpush.xpose.msra.mxu0 0.0
    %443 = vmatpush.xpose.msra.mxu0 0.0
    %444 = vmatpush.xpose.msra.mxu0 0.0
    %445 = vmatpush.xpose.msra.mxu0 %v428
    %446 = vmatmul.f32.gmra.mxu0 %v426
    %v447 = vpop.f32.mrf.mxu0
    %v448 = vadd.f32 0.0, %v447
    %449 = vdwg.mxu0
    %450 = vrot.lane.b32.xlu0 %v290, 96
    %v451 = vpop.permute.xlu0 %450
    %v452 = vsel %vm295, %v290, 0
    %v454 = vsel %vm295, %v451, 0
    %456 = vmatpush.xpose.msra.mxu0 0.0
    %457 = vmatpush.xpose.msra.mxu0 0.0
    %458 = vmatpush.xpose.msra.mxu0 0.0
    %459 = vmatpush.xpose.msra.mxu0 0.0
    %460 = vmatpush.xpose.msra.mxu0 0.0
    %461 = vmatpush.xpose.msra.mxu0 0.0
    %462 = vmatpush.xpose.msra.mxu0 0.0
    %463 = vmatpush.xpose.msra.mxu0 0.0
    %464 = vmatpush.xpose.msra.mxu0 0.0
    %465 = vmatpush.xpose.msra.mxu0 0.0
    %466 = vmatpush.xpose.msra.mxu0 0.0
    %467 = vmatpush.xpose.msra.mxu0 0.0
    %468 = vmatpush.xpose.msra.mxu0 0.0
    %469 = vmatpush.xpose.msra.mxu0 0.0
    %470 = vmatpush.xpose.msra.mxu0 0.0
    %471 = vmatpush.xpose.msra.mxu0 %v454
    %472 = vmatmul.f32.gmra.mxu0 %v452
    %v473 = vpop.f32.mrf.mxu0
    %v474 = vadd.f32 0.0, %v473
    %475 = vdwg.mxu0
    %476 = vrot.lane.b32.xlu0 %v292, 96
    %v477 = vpop.permute.xlu0 %476
    %v478 = vsel %vm295, %v292, 0
    %v480 = vsel %vm295, %v477, 0
    %482 = vmatpush.xpose.msra.mxu0 0.0
    %483 = vmatpush.xpose.msra.mxu0 0.0
    %484 = vmatpush.xpose.msra.mxu0 0.0
    %485 = vmatpush.xpose.msra.mxu0 0.0
    %486 = vmatpush.xpose.msra.mxu0 0.0
    %487 = vmatpush.xpose.msra.mxu0 0.0
    %488 = vmatpush.xpose.msra.mxu0 0.0
    %489 = vmatpush.xpose.msra.mxu0 0.0
    %490 = vmatpush.xpose.msra.mxu0 0.0
    %491 = vmatpush.xpose.msra.mxu0 0.0
    %492 = vmatpush.xpose.msra.mxu0 0.0
    %493 = vmatpush.xpose.msra.mxu0 0.0
    %494 = vmatpush.xpose.msra.mxu0 0.0
    %495 = vmatpush.xpose.msra.mxu0 0.0
    %496 = vmatpush.xpose.msra.mxu0 0.0
    %497 = vmatpush.xpose.msra.mxu0 %v480
    %498 = vmatmul.f32.gmra.mxu0 %v478
    %v499 = vpop.f32.mrf.mxu0
    %v500 = vadd.f32 0.0, %v499
    %501 = vdwg.mxu0
    %v502 = vsel %vm295, %v318, -inf
    %503 = vmax.xlane.f32.xlu0 %v502
    %v504 = vpop.xlane.xlu0 %503
    %v505 = vsel %vm295, %v344, -inf
    %506 = vmax.xlane.f32.xlu0 %v505
    %v507 = vpop.xlane.xlu0 %506
    %v508 = vsel %vm295, %v370, -inf
    %509 = vmax.xlane.f32.xlu0 %v508
    %v510 = vpop.xlane.xlu0 %509
    %v511 = vsel %vm295, %v396, -inf
    %512 = vmax.xlane.f32.xlu0 %v511
    %v513 = vpop.xlane.xlu0 %512
    %v514 = vsel %vm295, %v422, -inf
    %515 = vmax.xlane.f32.xlu0 %v514
    %v516 = vpop.xlane.xlu0 %515
    %v517 = vsel %vm295, %v448, -inf
    %518 = vmax.xlane.f32.xlu0 %v517
    %v519 = vpop.xlane.xlu0 %518
    %v520 = vsel %vm295, %v474, -inf
    %521 = vmax.xlane.f32.xlu0 %v520
    %v522 = vpop.xlane.xlu0 %521
    %v523 = vsel %vm295, %v500, -inf
    %524 = vmax.xlane.f32.xlu0 %v523
    %v525 = vpop.xlane.xlu0 %524
    %v526 = vsub.f32 %v318, %v504
    %v527 = vsub.f32 %v344, %v507
    %v528 = vsub.f32 %v370, %v510
    %v529 = vsub.f32 %v396, %v513
    %v530 = vsub.f32 %v422, %v516
    %v531 = vsub.f32 %v448, %v519
    %v532 = vsub.f32 %v474, %v522
    %v533 = vsub.f32 %v500, %v525
    %v534 = vmul.f32 %v526, 1.442695
    %v535 = vpow.pop %v534
    %v536 = vmul.f32 %v527, 1.442695
    %v537 = vpow.pop %v536
    %v538 = vmul.f32 %v528, 1.442695
    %v539 = vpow.pop %v538
    %v540 = vmul.f32 %v529, 1.442695
    %v541 = vpow.pop %v540
    %v542 = vmul.f32 %v530, 1.442695
    %v543 = vpow.pop %v542
    %v544 = vmul.f32 %v531, 1.442695
    %v545 = vpow.pop %v544
    %v546 = vmul.f32 %v532, 1.442695
    %v547 = vpow.pop %v546
    %v548 = vmul.f32 %v533, 1.442695
    %v549 = vpow.pop %v548
    %v550 = vsel %vm295, %v535, 0.0
    %551 = vadd.xlane.f32.xlu0 %v550
    %v552 = vpop.xlane.xlu0 %551
    %v553 = vsel %vm295, %v537, 0.0
    %554 = vadd.xlane.f32.xlu0 %v553
    %v555 = vpop.xlane.xlu0 %554
    %v556 = vsel %vm295, %v539, 0.0
    %557 = vadd.xlane.f32.xlu0 %v556
    %v558 = vpop.xlane.xlu0 %557
    %v559 = vsel %vm295, %v541, 0.0
    %560 = vadd.xlane.f32.xlu0 %v559
    %v561 = vpop.xlane.xlu0 %560
    %v562 = vsel %vm295, %v543, 0.0
    %563 = vadd.xlane.f32.xlu0 %v562
    %v564 = vpop.xlane.xlu0 %563
    %v565 = vsel %vm295, %v545, 0.0
    %566 = vadd.xlane.f32.xlu0 %v565
    %v567 = vpop.xlane.xlu0 %566
    %v568 = vsel %vm295, %v547, 0.0
    %569 = vadd.xlane.f32.xlu0 %v568
    %v570 = vpop.xlane.xlu0 %569
    %v571 = vsel %vm295, %v549, 0.0
    %572 = vadd.xlane.f32.xlu0 %v571
    %v573 = vpop.xlane.xlu0 %572
    %v574 = vrcp.pop %v552
    %v575 = vmul.f32 %v552, %v574
    %v576 = vsub.f32 1.0, %v575
    %v577 = vmul.f32 %v574, %v576
    %v578 = vadd.f32 %v574, %v577
    %vm579 = vweird.f32 %v552
    %vm580 = vweird.f32 %v574
    %vm581 = vmor %vm579, %vm580
    %v582 = vsel %vm581, %v574, %v578
    %v583 = vand.u32 2147483647, %v552
    %vm584 = vcmp.eq.f32.partialorder %v583, 8.507059e+37
    %v585 = vand.u32 %v552, 2147483648
    %v586 = vor.u32 1.1754944e-38, %v585
    %v587 = vsel %vm584, %v586, %v582
    %v588 = vmul.f32 %v535, %v587
    %v589 = vrcp.pop %v555
    %v590 = vmul.f32 %v555, %v589
    %v591 = vsub.f32 1.0, %v590
    %v592 = vmul.f32 %v589, %v591
    %v593 = vadd.f32 %v589, %v592
    %vm594 = vweird.f32 %v555
    %vm595 = vweird.f32 %v589
    %vm596 = vmor %vm594, %vm595
    %v597 = vsel %vm596, %v589, %v593
    %v598 = vand.u32 2147483647, %v555
    %vm599 = vcmp.eq.f32.partialorder %v598, 8.507059e+37
    %v600 = vand.u32 %v555, 2147483648
    %v601 = vor.u32 1.1754944e-38, %v600
    %v602 = vsel %vm599, %v601, %v597
    %v603 = vmul.f32 %v537, %v602
    %v604 = vrcp.pop %v558
    %v605 = vmul.f32 %v558, %v604
    %v606 = vsub.f32 1.0, %v605
    %v607 = vmul.f32 %v604, %v606
    %v608 = vadd.f32 %v604, %v607
    %vm609 = vweird.f32 %v558
    %vm610 = vweird.f32 %v604
    %vm611 = vmor %vm609, %vm610
    %v612 = vsel %vm611, %v604, %v608
    %v613 = vand.u32 2147483647, %v558
    %vm614 = vcmp.eq.f32.partialorder %v613, 8.507059e+37
    %v615 = vand.u32 %v558, 2147483648
    %v616 = vor.u32 1.1754944e-38, %v615
    %v617 = vsel %vm614, %v616, %v612
    %v618 = vmul.f32 %v539, %v617
    %v619 = vrcp.pop %v561
    %v620 = vmul.f32 %v561, %v619
    %v621 = vsub.f32 1.0, %v620
    %v622 = vmul.f32 %v619, %v621
    %v623 = vadd.f32 %v619, %v622
    %vm624 = vweird.f32 %v561
    %vm625 = vweird.f32 %v619
    %vm626 = vmor %vm624, %vm625
    %v627 = vsel %vm626, %v619, %v623
    %v628 = vand.u32 2147483647, %v561
    %vm629 = vcmp.eq.f32.partialorder %v628, 8.507059e+37
    %v630 = vand.u32 %v561, 2147483648
    %v631 = vor.u32 1.1754944e-38, %v630
    %v632 = vsel %vm629, %v631, %v627
    %v633 = vmul.f32 %v541, %v632
    %v634 = vrcp.pop %v564
    %v635 = vmul.f32 %v564, %v634
    %v636 = vsub.f32 1.0, %v635
    %v637 = vmul.f32 %v634, %v636
    %v638 = vadd.f32 %v634, %v637
    %vm639 = vweird.f32 %v564
    %vm640 = vweird.f32 %v634
    %vm641 = vmor %vm639, %vm640
    %v642 = vsel %vm641, %v634, %v638
    %v643 = vand.u32 2147483647, %v564
    %vm644 = vcmp.eq.f32.partialorder %v643, 8.507059e+37
    %v645 = vand.u32 %v564, 2147483648
    %v646 = vor.u32 1.1754944e-38, %v645
    %v647 = vsel %vm644, %v646, %v642
    %v648 = vmul.f32 %v543, %v647
    %v649 = vrcp.pop %v567
    %v650 = vmul.f32 %v567, %v649
    %v651 = vsub.f32 1.0, %v650
    %v652 = vmul.f32 %v649, %v651
    %v653 = vadd.f32 %v649, %v652
    %vm654 = vweird.f32 %v567
    %vm655 = vweird.f32 %v649
    %vm656 = vmor %vm654, %vm655
    %v657 = vsel %vm656, %v649, %v653
    %v658 = vand.u32 2147483647, %v567
    %vm659 = vcmp.eq.f32.partialorder %v658, 8.507059e+37
    %v660 = vand.u32 %v567, 2147483648
    %v661 = vor.u32 1.1754944e-38, %v660
    %v662 = vsel %vm659, %v661, %v657
    %v663 = vmul.f32 %v545, %v662
    %v664 = vrcp.pop %v570
    %v665 = vmul.f32 %v570, %v664
    %v666 = vsub.f32 1.0, %v665
    %v667 = vmul.f32 %v664, %v666
    %v668 = vadd.f32 %v664, %v667
    %vm669 = vweird.f32 %v570
    %vm670 = vweird.f32 %v664
    %vm671 = vmor %vm669, %vm670
    %v672 = vsel %vm671, %v664, %v668
    %v673 = vand.u32 2147483647, %v570
    %vm674 = vcmp.eq.f32.partialorder %v673, 8.507059e+37
    %v675 = vand.u32 %v570, 2147483648
    %v676 = vor.u32 1.1754944e-38, %v675
    %v677 = vsel %vm674, %v676, %v672
    %v678 = vmul.f32 %v547, %v677
    %v679 = vrcp.pop %v573
    %v680 = vmul.f32 %v573, %v679
    %v681 = vsub.f32 1.0, %v680
    %v682 = vmul.f32 %v679, %v681
    %v683 = vadd.f32 %v679, %v682
    %vm684 = vweird.f32 %v573
    %vm685 = vweird.f32 %v679
    %vm686 = vmor %vm684, %vm685
    %v687 = vsel %vm686, %v679, %v683
    %v688 = vand.u32 2147483647, %v573
    %vm689 = vcmp.eq.f32.partialorder %v688, 8.507059e+37
    %v690 = vand.u32 %v573, 2147483648
    %v691 = vor.u32 1.1754944e-38, %v690
    %v692 = vsel %vm689, %v691, %v687
    %v693 = vmul.f32 %v549, %v692
    %694 = vrot.lane.b32.xlu0 %v274, 64
    %v695 = vpop.permute.xlu0 %694
    %v698 = vsel %vm295, %v588, 0
    %700 = vmatpush.msra.mxu0 0.0
    %701 = vmatpush.msra.mxu0 0.0
    %702 = vmatpush.msra.mxu0 0.0
    %703 = vmatpush.msra.mxu0 0.0
    %704 = vmatpush.msra.mxu0 0.0
    %705 = vmatpush.msra.mxu0 0.0
    %706 = vmatpush.msra.mxu0 0.0
    %707 = vmatpush.msra.mxu0 0.0
    %708 = vmatpush.msra.mxu0 0.0
    %709 = vmatpush.msra.mxu0 0.0
    %710 = vmatpush.msra.mxu0 0.0
    %711 = vmatpush.msra.mxu0 0.0
    %712 = vmatpush.msra.mxu0 0.0
    %713 = vmatpush.msra.mxu0 0.0
    %714 = vmatpush.msra.mxu0 0.0
    %715 = vmatpush.msra.mxu0 %v695
    %716 = vmatmul.f32.gmra.mxu0 %v698
    %v717 = vpop.f32.mrf.mxu0
    %v718 = vadd.f32 0.0, %v717
    %719 = vdwg.mxu0
    %720 = vrot.lane.b32.xlu0 %v277, 64
    %v721 = vpop.permute.xlu0 %720
    %v724 = vsel %vm295, %v603, 0
    %726 = vmatpush.msra.mxu0 0.0
    %727 = vmatpush.msra.mxu0 0.0
    %728 = vmatpush.msra.mxu0 0.0
    %729 = vmatpush.msra.mxu0 0.0
    %730 = vmatpush.msra.mxu0 0.0
    %731 = vmatpush.msra.mxu0 0.0
    %732 = vmatpush.msra.mxu0 0.0
    %733 = vmatpush.msra.mxu0 0.0
    %734 = vmatpush.msra.mxu0 0.0
    %735 = vmatpush.msra.mxu0 0.0
    %736 = vmatpush.msra.mxu0 0.0
    %737 = vmatpush.msra.mxu0 0.0
    %738 = vmatpush.msra.mxu0 0.0
    %739 = vmatpush.msra.mxu0 0.0
    %740 = vmatpush.msra.mxu0 0.0
    %741 = vmatpush.msra.mxu0 %v721
    %742 = vmatmul.f32.gmra.mxu0 %v724
    %v743 = vpop.f32.mrf.mxu0
    %v744 = vadd.f32 0.0, %v743
    %745 = vdwg.mxu0
    %746 = vrot.lane.b32.xlu0 %v282, 64
    %v747 = vpop.permute.xlu0 %746
    %v750 = vsel %vm295, %v618, 0
    %752 = vmatpush.msra.mxu0 0.0
    %753 = vmatpush.msra.mxu0 0.0
    %754 = vmatpush.msra.mxu0 0.0
    %755 = vmatpush.msra.mxu0 0.0
    %756 = vmatpush.msra.mxu0 0.0
    %757 = vmatpush.msra.mxu0 0.0
    %758 = vmatpush.msra.mxu0 0.0
    %759 = vmatpush.msra.mxu0 0.0
    %760 = vmatpush.msra.mxu0 0.0
    %761 = vmatpush.msra.mxu0 0.0
    %762 = vmatpush.msra.mxu0 0.0
    %763 = vmatpush.msra.mxu0 0.0
    %764 = vmatpush.msra.mxu0 0.0
    %765 = vmatpush.msra.mxu0 0.0
    %766 = vmatpush.msra.mxu0 0.0
    %767 = vmatpush.msra.mxu0 %v747
    %768 = vmatmul.f32.gmra.mxu0 %v750
    %v769 = vpop.f32.mrf.mxu0
    %v770 = vadd.f32 0.0, %v769
    %771 = vdwg.mxu0
    %772 = vrot.lane.b32.xlu0 %v284, 64
    %v773 = vpop.permute.xlu0 %772
    %v776 = vsel %vm295, %v633, 0
    %778 = vmatpush.msra.mxu0 0.0
    %779 = vmatpush.msra.mxu0 0.0
    %780 = vmatpush.msra.mxu0 0.0
    %781 = vmatpush.msra.mxu0 0.0
    %782 = vmatpush.msra.mxu0 0.0
    %783 = vmatpush.msra.mxu0 0.0
    %784 = vmatpush.msra.mxu0 0.0
    %785 = vmatpush.msra.mxu0 0.0
    %786 = vmatpush.msra.mxu0 0.0
    %787 = vmatpush.msra.mxu0 0.0
    %788 = vmatpush.msra.mxu0 0.0
    %789 = vmatpush.msra.mxu0 0.0
    %790 = vmatpush.msra.mxu0 0.0
    %791 = vmatpush.msra.mxu0 0.0
    %792 = vmatpush.msra.mxu0 0.0
    %793 = vmatpush.msra.mxu0 %v773
    %794 = vmatmul.f32.gmra.mxu0 %v776
    %v795 = vpop.f32.mrf.mxu0
    %v796 = vadd.f32 0.0, %v795
    %797 = vdwg.mxu0
    %798 = vrot.lane.b32.xlu0 %v286, 64
    %v799 = vpop.permute.xlu0 %798
    %v802 = vsel %vm295, %v648, 0
    %804 = vmatpush.msra.mxu0 0.0
    %805 = vmatpush.msra.mxu0 0.0
    %806 = vmatpush.msra.mxu0 0.0
    %807 = vmatpush.msra.mxu0 0.0
    %808 = vmatpush.msra.mxu0 0.0
    %809 = vmatpush.msra.mxu0 0.0
    %810 = vmatpush.msra.mxu0 0.0
    %811 = vmatpush.msra.mxu0 0.0
    %812 = vmatpush.msra.mxu0 0.0
    %813 = vmatpush.msra.mxu0 0.0
    %814 = vmatpush.msra.mxu0 0.0
    %815 = vmatpush.msra.mxu0 0.0
    %816 = vmatpush.msra.mxu0 0.0
    %817 = vmatpush.msra.mxu0 0.0
    %818 = vmatpush.msra.mxu0 0.0
    %819 = vmatpush.msra.mxu0 %v799
    %820 = vmatmul.f32.gmra.mxu0 %v802
    %v821 = vpop.f32.mrf.mxu0
    %v822 = vadd.f32 0.0, %v821
    %823 = vdwg.mxu0
    %824 = vrot.lane.b32.xlu0 %v288, 64
    %v825 = vpop.permute.xlu0 %824
    %v828 = vsel %vm295, %v663, 0
    %830 = vmatpush.msra.mxu0 0.0
    %831 = vmatpush.msra.mxu0 0.0
    %832 = vmatpush.msra.mxu0 0.0
    %833 = vmatpush.msra.mxu0 0.0
    %834 = vmatpush.msra.mxu0 0.0
    %835 = vmatpush.msra.mxu0 0.0
    %836 = vmatpush.msra.mxu0 0.0
    %837 = vmatpush.msra.mxu0 0.0
    %838 = vmatpush.msra.mxu0 0.0
    %839 = vmatpush.msra.mxu0 0.0
    %840 = vmatpush.msra.mxu0 0.0
    %841 = vmatpush.msra.mxu0 0.0
    %842 = vmatpush.msra.mxu0 0.0
    %843 = vmatpush.msra.mxu0 0.0
    %844 = vmatpush.msra.mxu0 0.0
    %845 = vmatpush.msra.mxu0 %v825
    %846 = vmatmul.f32.gmra.mxu0 %v828
    %v847 = vpop.f32.mrf.mxu0
    %v848 = vadd.f32 0.0, %v847
    %849 = vdwg.mxu0
    %850 = vrot.lane.b32.xlu0 %v290, 64
    %v851 = vpop.permute.xlu0 %850
    %v854 = vsel %vm295, %v678, 0
    %856 = vmatpush.msra.mxu0 0.0
    %857 = vmatpush.msra.mxu0 0.0
    %858 = vmatpush.msra.mxu0 0.0
    %859 = vmatpush.msra.mxu0 0.0
    %860 = vmatpush.msra.mxu0 0.0
    %861 = vmatpush.msra.mxu0 0.0
    %862 = vmatpush.msra.mxu0 0.0
    %863 = vmatpush.msra.mxu0 0.0
    %864 = vmatpush.msra.mxu0 0.0
    %865 = vmatpush.msra.mxu0 0.0
    %866 = vmatpush.msra.mxu0 0.0
    %867 = vmatpush.msra.mxu0 0.0
    %868 = vmatpush.msra.mxu0 0.0
    %869 = vmatpush.msra.mxu0 0.0
    %870 = vmatpush.msra.mxu0 0.0
    %871 = vmatpush.msra.mxu0 %v851
    %872 = vmatmul.f32.gmra.mxu0 %v854
    %v873 = vpop.f32.mrf.mxu0
    %v874 = vadd.f32 0.0, %v873
    %875 = vdwg.mxu0
    %876 = vrot.lane.b32.xlu0 %v292, 64
    %v877 = vpop.permute.xlu0 %876
    %v880 = vsel %vm295, %v693, 0
    %882 = vmatpush.msra.mxu0 0.0
    %883 = vmatpush.msra.mxu0 0.0
    %884 = vmatpush.msra.mxu0 0.0
    %885 = vmatpush.msra.mxu0 0.0
    %886 = vmatpush.msra.mxu0 0.0
    %887 = vmatpush.msra.mxu0 0.0
    %888 = vmatpush.msra.mxu0 0.0
    %889 = vmatpush.msra.mxu0 0.0
    %890 = vmatpush.msra.mxu0 0.0
    %891 = vmatpush.msra.mxu0 0.0
    %892 = vmatpush.msra.mxu0 0.0
    %893 = vmatpush.msra.mxu0 0.0
    %894 = vmatpush.msra.mxu0 0.0
    %895 = vmatpush.msra.mxu0 0.0
    %896 = vmatpush.msra.mxu0 0.0
    %897 = vmatpush.msra.mxu0 %v877
    %898 = vmatmul.f32.gmra.mxu0 %v880
    %v899 = vpop.f32.mrf.mxu0
    %v900 = vadd.f32 0.0, %v899
    %901 = vdwg.mxu0
    %904 = vrot.lane.b32.xlu0 %v770, 8
    %v905 = vpop.permute.xlu0 %904
    %906 = vrot.lane.b32.xlu0 %v796, 8
    %v907 = vpop.permute.xlu0 %906
    %912 = vrot.lane.b32.xlu0 %v822, 16
    %v913 = vpop.permute.xlu0 %912
    %914 = vrot.lane.b32.xlu0 %v848, 16
    %v915 = vpop.permute.xlu0 %914
    %920 = vrot.lane.b32.xlu0 %v874, 24
    %v921 = vpop.permute.xlu0 %920
    %922 = vrot.lane.b32.xlu0 %v900, 24
    %v923 = vpop.permute.xlu0 %922
    %v926 = vsel %vm295, %v718, %v905
    %v927 = vsel %vm295, %v744, %v907
    %v928 = vsel %vm145, %v926, %v913
    %v929 = vsel %vm145, %v927, %v915
    %vm930 = vcmask 195584
    %v931 = vsel %vm930, %v928, %v921
    %v932 = vsel %vm930, %v929, %v923
    %v933 = vld [vmem:[%s8] sm:$0xff]
    %v934 = vld [vmem:[%s8 + $0x8] sm:$0xff]
    %v935 = vld [vmem:[%s8 + $0x10] sm:$0xff]
    %v936 = vld [vmem:[%s8 + $0x18] sm:$0xff]
    %v937 = vld [vmem:[%s9] sm:$0x1]
    %v939 = vperm.slane %v937, 0
    %v942 = vsel %vm180, %v931, 0
    %v945 = vsel %vm180, %v932, 0
    %947 = vmatpush.msra.mxu0 0.0
    %948 = vmatpush.msra.mxu0 0.0
    %949 = vmatpush.msra.mxu0 0.0
    %950 = vmatpush.msra.mxu0 0.0
    %951 = vmatpush.msra.mxu0 0.0
    %952 = vmatpush.msra.mxu0 0.0
    %953 = vmatpush.msra.mxu0 0.0
    %954 = vmatpush.msra.mxu0 0.0
    %955 = vmatpush.msra.mxu0 0.0
    %956 = vmatpush.msra.mxu0 0.0
    %957 = vmatpush.msra.mxu0 0.0
    %958 = vmatpush.msra.mxu0 0.0
    %959 = vmatpush.msra.mxu0 %v936
    %960 = vmatpush.msra.mxu0 %v935
    %961 = vmatpush.msra.mxu0 %v934
    %962 = vmatpush.msra.mxu0 %v933
    %963 = vmatmul.f32.gmra.mxu0 %v942
    %v964 = vpop.f32.mrf.mxu0
    %v965 = vadd.f32 %v939, %v964
    %966 = vmatmul.f32.gmra.mxu0 %v945
    %v967 = vpop.f32.mrf.mxu0
    %v968 = vadd.f32 %v939, %v967
    %969 = vdwg.mxu0
    %v970 = vadd.f32 %v965, %v240
    %v971 = vadd.f32 %v968, %v241
    %v972 = vld [vmem:[%s10] sm:$0x1]
    %v973 = vld [vmem:[%s11] sm:$0x1]
    %v974 = vsel %vm180, %v970, 0.0
    %975 = vadd.xlane.f32.xlu0 %v974
    %v976 = vpop.xlane.xlu0 %975
    %v977 = vsel %vm180, %v971, 0.0
    %978 = vadd.xlane.f32.xlu0 %v977
    %v979 = vpop.xlane.xlu0 %978
    %v980 = vmul.f32 %v976, %v193
    %v981 = vmul.f32 %v979, %v193
    %v982 = vsub.f32 %v970, %v980
    %v983 = vsub.f32 %v971, %v981
    %v984 = vmul.f32 %v982, %v982
    %v985 = vmul.f32 %v983, %v983
    %v986 = vsel %vm180, %v984, 0.0
    %987 = vadd.xlane.f32.xlu0 %v986
    %v988 = vpop.xlane.xlu0 %987
    %v989 = vsel %vm180, %v985, 0.0
    %990 = vadd.xlane.f32.xlu0 %v989
    %v991 = vpop.xlane.xlu0 %990
    %v992 = vmul.f32 %v988, %v193
    %v993 = vmul.f32 %v991, %v193
    %v994 = vadd.f32 %v992, 1e-12
    %v995 = vadd.f32 %v993, 1e-12
    %v996 = vrsqrt.pop %v994
    %v997 = vmul.f32 %v996, %v994
    %v998 = vmul.f32 %v997, %v996
    %v999 = vmul.f32 0.5, %v998
    %v1000 = vsub.f32 1.5, %v999
    %v1001 = vmul.f32 %v996, %v1000
    %vm1002 = vweird.f32 %v994
    %vm1003 = vweird.f32 %v996
    %vm1004 = vmor %vm1002, %vm1003
    %v1005 = vsel %vm1004, %v996, %v1001
    %v1006 = vrsqrt.pop %v995
    %v1007 = vmul.f32 %v1006, %v995
    %v1008 = vmul.f32 %v1007, %v1006
    %v1009 = vmul.f32 0.5, %v1008
    %v1010 = vsub.f32 1.5, %v1009
    %v1011 = vmul.f32 %v1006, %v1010
    %vm1012 = vweird.f32 %v995
    %vm1013 = vweird.f32 %v1006
    %vm1014 = vmor %vm1012, %vm1013
    %v1015 = vsel %vm1014, %v1006, %v1011
    %v1016 = vmul.f32 %v982, %v1005
    %v1017 = vmul.f32 %v983, %v1015
    %v1019 = vperm.slane %v972, 0
    %v1021 = vmul.f32 %v1016, %v1019
    %v1022 = vmul.f32 %v1017, %v1019
    %v1024 = vperm.slane %v973, 0
    %v1026 = vadd.f32 %v1021, %v1024
    %v1027 = vadd.f32 %v1022, %v1024
    %v1028 = vld [vmem:[%s12] sm:$0xff]
    %v1029 = vld [vmem:[%s12 + $0x8] sm:$0xff]
    %v1030 = vld [vmem:[%s12 + $0x10] sm:$0xff]
    %v1031 = vld [vmem:[%s12 + $0x18] sm:$0xff]
    %v1032 = vld [vmem:[%s13] sm:$0x1]
    %v1034 = vperm.slane %v1032, 0
    %v1037 = vsel %vm180, %v1026, 0
    %v1040 = vsel %vm180, %v1027, 0
    %1042 = vmatpush.msra.mxu0 0.0
    %1043 = vmatpush.msra.mxu0 0.0
    %1044 = vmatpush.msra.mxu0 0.0
    %1045 = vmatpush.msra.mxu0 0.0
    %1046 = vmatpush.msra.mxu0 0.0
    %1047 = vmatpush.msra.mxu0 0.0
    %1048 = vmatpush.msra.mxu0 0.0
    %1049 = vmatpush.msra.mxu0 0.0
    %1050 = vmatpush.msra.mxu0 0.0
    %1051 = vmatpush.msra.mxu0 0.0
    %1052 = vmatpush.msra.mxu0 0.0
    %1053 = vmatpush.msra.mxu0 0.0
    %1054 = vmatpush.msra.mxu0 %v1031
    %1055 = vmatpush.msra.mxu0 %v1030
    %1056 = vmatpush.msra.mxu0 %v1029
    %1057 = vmatpush.msra.mxu0 %v1028
    %1058 = vmatmul.f32.gmra.mxu0 %v1037
    %v1059 = vpop.f32.mrf.mxu0
    %v1060 = vadd.f32 %v1034, %v1059
    %1061 = vmatmul.f32.gmra.mxu0 %v1040
    %v1062 = vpop.f32.mrf.mxu0
    %v1063 = vadd.f32 %v1034, %v1062
    %1064 = vdwg.mxu0
    %v1065 = vmul.f32 %v1060, 0.5
    %v1066 = vmul.f32 %v1063, 0.5
    %v1067 = vrcp.pop 1.4142135
    %v1068 = vmul.f32 1.4142135, %v1067
    %v1069 = vsub.f32 1.0, %v1068
    %v1070 = vmul.f32 %v1067, %v1069
    %v1071 = vadd.f32 %v1067, %v1070
    %vm1072 = vweird.f32 %v1067
    %v1073 = vsel %vm1072, %v1067, %v1071
    %v1074 = vmul.f32 %v1060, %v1073
    %v1075 = vmul.f32 %v1063, %v1073
    %v1076 = vmul.f32 %v1074, %v1074
    %v1077 = vmin.f32 16.0, %v1076
    %v1078 = vmul.f32 %v1077, 2.1237322e-06
    %v1079 = vadd.f32 %v1078, 0.00028619796
    %v1080 = vmul.f32 %v1077, %v1079
    %v1081 = vadd.f32 %v1080, 0.0036580483
    %v1082 = vmul.f32 %v1077, %v1081
    %v1083 = vadd.f32 %v1082, 0.05243302
    %v1084 = vmul.f32 %v1077, %v1083
    %v1085 = vadd.f32 %v1084, 0.18741608
    %v1086 = vmul.f32 %v1077, %v1085
    %v1087 = vadd.f32 %v1086, 1.1283791
    %v1088 = vmul.f32 %v1074, %v1087
    %v1089 = vmul.f32 %v1077, 3.8918573e-05
    %v1090 = vadd.f32 %v1089, 0.001143296
    %v1091 = vmul.f32 %v1077, %v1090
    %v1092 = vadd.f32 %v1091, 0.014752088
    %v1093 = vmul.f32 %v1077, %v1092
    %v1094 = vadd.f32 %v1093, 0.112945676
    %v1095 = vmul.f32 %v1077, %v1094
    %v1096 = vadd.f32 %v1095, 0.4994258
    %v1097 = vmul.f32 %v1077, %v1096
    %v1098 = vadd.f32 %v1097, 1.0
    %v1099 = vrcp.pop %v1098
    %v1100 = vmul.f32 %v1098, %v1099
    %v1101 = vsub.f32 1.0, %v1100
    %v1102 = vmul.f32 %v1099, %v1101
    %v1103 = vadd.f32 %v1099, %v1102
    %vm1104 = vweird.f32 %v1098
    %vm1105 = vweird.f32 %v1099
    %vm1106 = vmor %vm1104, %vm1105
    %v1107 = vsel %vm1106, %v1099, %v1103
    %v1108 = vand.u32 2147483647, %v1098
    %vm1109 = vcmp.eq.f32.partialorder %v1108, 8.507059e+37
    %v1110 = vand.u32 %v1098, 2147483648
    %v1111 = vor.u32 1.1754944e-38, %v1110
    %v1112 = vsel %vm1109, %v1111, %v1107
    %v1113 = vmul.f32 %v1088, %v1112
    %v1114 = vmin.f32 %v1113, 1.0
    %v1115 = vmax.f32 %v1114, -1.0
    %v1116 = vmul.f32 %v1075, %v1075
    %v1117 = vmin.f32 16.0, %v1116
    %v1118 = vmul.f32 %v1117, 2.1237322e-06
    %v1119 = vadd.f32 %v1118, 0.00028619796
    %v1120 = vmul.f32 %v1117, %v1119
    %v1121 = vadd.f32 %v1120, 0.0036580483
    %v1122 = vmul.f32 %v1117, %v1121
    %v1123 = vadd.f32 %v1122, 0.05243302
    %v1124 = vmul.f32 %v1117, %v1123
    %v1125 = vadd.f32 %v1124, 0.18741608
    %v1126 = vmul.f32 %v1117, %v1125
    %v1127 = vadd.f32 %v1126, 1.1283791
    %v1128 = vmul.f32 %v1075, %v1127
    %v1129 = vmul.f32 %v1117, 3.8918573e-05
    %v1130 = vadd.f32 %v1129, 0.001143296
    %v1131 = vmul.f32 %v1117, %v1130
    %v1132 = vadd.f32 %v1131, 0.014752088
    %v1133 = vmul.f32 %v1117, %v1132
    %v1134 = vadd.f32 %v1133, 0.112945676
    %v1135 = vmul.f32 %v1117, %v1134
    %v1136 = vadd.f32 %v1135, 0.4994258
    %v1137 = vmul.f32 %v1117, %v1136
    %v1138 = vadd.f32 %v1137, 1.0
    %v1139 = vrcp.pop %v1138
    %v1140 = vmul.f32 %v1138, %v1139
    %v1141 = vsub.f32 1.0, %v1140
    %v1142 = vmul.f32 %v1139, %v1141
    %v1143 = vadd.f32 %v1139, %v1142
    %vm1144 = vweird.f32 %v1138
    %vm1145 = vweird.f32 %v1139
    %vm1146 = vmor %vm1144, %vm1145
    %v1147 = vsel %vm1146, %v1139, %v1143
    %v1148 = vand.u32 2147483647, %v1138
    %vm1149 = vcmp.eq.f32.partialorder %v1148, 8.507059e+37
    %v1150 = vand.u32 %v1138, 2147483648
    %v1151 = vor.u32 1.1754944e-38, %v1150
    %v1152 = vsel %vm1149, %v1151, %v1147
    %v1153 = vmul.f32 %v1128, %v1152
    %v1154 = vmin.f32 %v1153, 1.0
    %v1155 = vmax.f32 %v1154, -1.0
    %v1156 = vadd.f32 %v1115, 1.0
    %v1157 = vadd.f32 %v1155, 1.0
    %v1158 = vmul.f32 %v1065, %v1156
    %v1159 = vmul.f32 %v1066, %v1157
    %v1160 = vld [vmem:[%s14] sm:$0xff]
    %v1161 = vld [vmem:[%s14 + $0x8] sm:$0xff]
    %v1162 = vld [vmem:[%s14 + $0x10] sm:$0xff]
    %v1163 = vld [vmem:[%s14 + $0x18] sm:$0xff]
    %v1164 = vld [vmem:[%s14 + $0x20] sm:$0xff]
    %v1165 = vld [vmem:[%s14 + $0x28] sm:$0xff]
    %v1166 = vld [vmem:[%s14 + $0x30] sm:$0xff]
    %v1167 = vld [vmem:[%s14 + $0x38] sm:$0xff]
    %v1168 = vld [vmem:[%s15] sm:$0x1]
    %v1170 = vperm.slane %v1168, 0
    %vm1172 = vcmask 523264
    %v1174 = vsel %vm1172, %v1158, 0
    %v1177 = vsel %vm1172, %v1159, 0
    %1179 = vmatpush.msra.mxu0 0.0
    %1180 = vmatpush.msra.mxu0 0.0
    %1181 = vmatpush.msra.mxu0 0.0
    %1182 = vmatpush.msra.mxu0 0.0
    %1183 = vmatpush.msra.mxu0 0.0
    %1184 = vmatpush.msra.mxu0 0.0
    %1185 = vmatpush.msra.mxu0 0.0
    %1186 = vmatpush.msra.mxu0 0.0
    %1187 = vmatpush.msra.mxu0 %v1167
    %1188 = vmatpush.msra.mxu0 %v1166
    %1189 = vmatpush.msra.mxu0 %v1165
    %1190 = vmatpush.msra.mxu0 %v1164
    %1191 = vmatpush.msra.mxu0 %v1163
    %1192 = vmatpush.msra.mxu0 %v1162
    %1193 = vmatpush.msra.mxu0 %v1161
    %1194 = vmatpush.msra.mxu0 %v1160
    %1195 = vmatmul.f32.gmra.mxu0 %v1174
    %v1196 = vpop.f32.mrf.mxu0
    %v1197 = vadd.f32 %v1170, %v1196
    %1198 = vmatmul.f32.gmra.mxu0 %v1177
    %v1199 = vpop.f32.mrf.mxu0
    %v1200 = vadd.f32 %v1170, %v1199
    %1201 = vdwg.mxu0
    %v1202 = vadd.f32 %v1197, %v1026
    %v1203 = vadd.f32 %v1200, %v1027
    %v1204 = vld [vmem:[%s16] sm:$0x1]
    %v1205 = vld [vmem:[#allocation7] sm:$0x1]
    %v1206 = vsel %vm180, %v1202, 0.0
    %1207 = vadd.xlane.f32.xlu0 %v1206
    %v1208 = vpop.xlane.xlu0 %1207
    %v1209 = vsel %vm180, %v1203, 0.0
    %1210 = vadd.xlane.f32.xlu0 %v1209
    %v1211 = vpop.xlane.xlu0 %1210
    %v1212 = vmul.f32 %v1208, %v193
    %v1213 = vmul.f32 %v1211, %v193
    %v1214 = vsub.f32 %v1202, %v1212
    %v1215 = vsub.f32 %v1203, %v1213
    %v1216 = vmul.f32 %v1214, %v1214
    %v1217 = vmul.f32 %v1215, %v1215
    %v1218 = vsel %vm180, %v1216, 0.0
    %1219 = vadd.xlane.f32.xlu0 %v1218
    %v1220 = vpop.xlane.xlu0 %1219
    %v1221 = vsel %vm180, %v1217, 0.0
    %1222 = vadd.xlane.f32.xlu0 %v1221
    %v1223 = vpop.xlane.xlu0 %1222
    %v1224 = vmul.f32 %v1220, %v193
    %v1225 = vmul.f32 %v1223, %v193
    %v1226 = vadd.f32 %v1224, 1e-12
    %v1227 = vadd.f32 %v1225, 1e-12
    %v1228 = vrsqrt.pop %v1226
    %v1229 = vmul.f32 %v1228, %v1226
    %v1230 = vmul.f32 %v1229, %v1228
    %v1231 = vmul.f32 0.5, %v1230
    %v1232 = vsub.f32 1.5, %v1231
    %v1233 = vmul.f32 %v1228, %v1232
    %vm1234 = vweird.f32 %v1226
    %vm1235 = vweird.f32 %v1228
    %vm1236 = vmor %vm1234, %vm1235
    %v1237 = vsel %vm1236, %v1228, %v1233
    %v1238 = vrsqrt.pop %v1227
    %v1239 = vmul.f32 %v1238, %v1227
    %v1240 = vmul.f32 %v1239, %v1238
    %v1241 = vmul.f32 0.5, %v1240
    %v1242 = vsub.f32 1.5, %v1241
    %v1243 = vmul.f32 %v1238, %v1242
    %vm1244 = vweird.f32 %v1227
    %vm1245 = vweird.f32 %v1238
    %vm1246 = vmor %vm1244, %vm1245
    %v1247 = vsel %vm1246, %v1238, %v1243
    %v1248 = vmul.f32 %v1214, %v1237
    %v1249 = vmul.f32 %v1215, %v1247
    %v1251 = vperm.slane %v1204, 0
    %v1253 = vmul.f32 %v1248, %v1251
    %v1254 = vmul.f32 %v1249, %v1251
    %v1256 = vperm.slane %v1205, 0
    %v1258 = vadd.f32 %v1253, %v1256
    %v1259 = vadd.f32 %v1254, %v1256
    %s1260 = scalar_lea.vmem %s6, 32
    %v1261 = vld [vmem:[%s1260] sm:$0xff]
    %v1262 = vld [vmem:[%s1260 + $0x8] sm:$0xff]
    %v1263 = vld [vmem:[%s1260 + $0x10] sm:$0xff]
    %v1264 = vld [vmem:[%s1260 + $0x18] sm:$0xff]
    %s1265 = scalar_lea.vmem %s7, 1
    %v1266 = vld [vmem:[%s1265] sm:$0x1]
    %v1268 = vperm.slane %v1266, 0
    %v1271 = vsel %vm180, %v1258, 0
    %v1274 = vsel %vm180, %v1259, 0
    %1276 = vmatpush.msra.mxu0 0.0
    %1277 = vmatpush.msra.mxu0 0.0
    %1278 = vmatpush.msra.mxu0 0.0
    %1279 = vmatpush.msra.mxu0 0.0
    %1280 = vmatpush.msra.mxu0 0.0
    %1281 = vmatpush.msra.mxu0 0.0
    %1282 = vmatpush.msra.mxu0 0.0
    %1283 = vmatpush.msra.mxu0 0.0
    %1284 = vmatpush.msra.mxu0 0.0
    %1285 = vmatpush.msra.mxu0 0.0
    %1286 = vmatpush.msra.mxu0 0.0
    %1287 = vmatpush.msra.mxu0 0.0
    %1288 = vmatpush.msra.mxu0 %v1264
    %1289 = vmatpush.msra.mxu0 %v1263
    %1290 = vmatpush.msra.mxu0 %v1262
    %1291 = vmatpush.msra.mxu0 %v1261
    %1292 = vmatmul.f32.gmra.mxu0 %v1271
    %v1293 = vpop.f32.mrf.mxu0
    %v1294 = vadd.f32 %v1268, %v1293
    %1295 = vmatmul.f32.gmra.mxu0 %v1274
    %v1296 = vpop.f32.mrf.mxu0
    %v1297 = vadd.f32 %v1268, %v1296
    %1298 = vdwg.mxu0
    %1301 = vrot.lane.b32.xlu0 %v1294, 120
    %v1302 = vpop.permute.xlu0 %1301
    %1303 = vrot.lane.b32.xlu0 %v1297, 120
    %v1304 = vpop.permute.xlu0 %1303
    %1305 = vrot.lane.b32.xlu0 %v1294, 112
    %v1306 = vpop.permute.xlu0 %1305
    %1307 = vrot.lane.b32.xlu0 %v1297, 112
    %v1308 = vpop.permute.xlu0 %1307
    %1309 = vrot.lane.b32.xlu0 %v1294, 104
    %v1310 = vpop.permute.xlu0 %1309
    %1311 = vrot.lane.b32.xlu0 %v1297, 104
    %v1312 = vpop.permute.xlu0 %1311
    %1313 = vrot.lane.b32.xlu0 %v1294, 96
    %v1314 = vpop.permute.xlu0 %1313
    %v1315 = vsel %vm295, %v1294, 0
    %v1317 = vsel %vm295, %v1314, 0
    %1319 = vmatpush.xpose.msra.mxu0 0.0
    %1320 = vmatpush.xpose.msra.mxu0 0.0
    %1321 = vmatpush.xpose.msra.mxu0 0.0
    %1322 = vmatpush.xpose.msra.mxu0 0.0
    %1323 = vmatpush.xpose.msra.mxu0 0.0
    %1324 = vmatpush.xpose.msra.mxu0 0.0
    %1325 = vmatpush.xpose.msra.mxu0 0.0
    %1326 = vmatpush.xpose.msra.mxu0 0.0
    %1327 = vmatpush.xpose.msra.mxu0 0.0
    %1328 = vmatpush.xpose.msra.mxu0 0.0
    %1329 = vmatpush.xpose.msra.mxu0 0.0
    %1330 = vmatpush.xpose.msra.mxu0 0.0
    %1331 = vmatpush.xpose.msra.mxu0 0.0
    %1332 = vmatpush.xpose.msra.mxu0 0.0
    %1333 = vmatpush.xpose.msra.mxu0 0.0
    %1334 = vmatpush.xpose.msra.mxu0 %v1317
    %1335 = vmatmul.f32.gmra.mxu0 %v1315
    %v1336 = vpop.f32.mrf.mxu0
    %v1337 = vadd.f32 0.0, %v1336
    %1338 = vdwg.mxu0
    %1339 = vrot.lane.b32.xlu0 %v1297, 96
    %v1340 = vpop.permute.xlu0 %1339
    %v1341 = vsel %vm295, %v1297, 0
    %v1343 = vsel %vm295, %v1340, 0
    %1345 = vmatpush.xpose.msra.mxu0 0.0
    %1346 = vmatpush.xpose.msra.mxu0 0.0
    %1347 = vmatpush.xpose.msra.mxu0 0.0
    %1348 = vmatpush.xpose.msra.mxu0 0.0
    %1349 = vmatpush.xpose.msra.mxu0 0.0
    %1350 = vmatpush.xpose.msra.mxu0 0.0
    %1351 = vmatpush.xpose.msra.mxu0 0.0
    %1352 = vmatpush.xpose.msra.mxu0 0.0
    %1353 = vmatpush.xpose.msra.mxu0 0.0
    %1354 = vmatpush.xpose.msra.mxu0 0.0
    %1355 = vmatpush.xpose.msra.mxu0 0.0
    %1356 = vmatpush.xpose.msra.mxu0 0.0
    %1357 = vmatpush.xpose.msra.mxu0 0.0
    %1358 = vmatpush.xpose.msra.mxu0 0.0
    %1359 = vmatpush.xpose.msra.mxu0 0.0
    %1360 = vmatpush.xpose.msra.mxu0 %v1343
    %1361 = vmatmul.f32.gmra.mxu0 %v1341
    %v1362 = vpop.f32.mrf.mxu0
    %v1363 = vadd.f32 0.0, %v1362
    %1364 = vdwg.mxu0
    %1365 = vrot.lane.b32.xlu0 %v1302, 96
    %v1366 = vpop.permute.xlu0 %1365
    %v1367 = vsel %vm295, %v1302, 0
    %v1369 = vsel %vm295, %v1366, 0
    %1371 = vmatpush.xpose.msra.mxu0 0.0
    %1372 = vmatpush.xpose.msra.mxu0 0.0
    %1373 = vmatpush.xpose.msra.mxu0 0.0
    %1374 = vmatpush.xpose.msra.mxu0 0.0
    %1375 = vmatpush.xpose.msra.mxu0 0.0
    %1376 = vmatpush.xpose.msra.mxu0 0.0
    %1377 = vmatpush.xpose.msra.mxu0 0.0
    %1378 = vmatpush.xpose.msra.mxu0 0.0
    %1379 = vmatpush.xpose.msra.mxu0 0.0
    %1380 = vmatpush.xpose.msra.mxu0 0.0
    %1381 = vmatpush.xpose.msra.mxu0 0.0
    %1382 = vmatpush.xpose.msra.mxu0 0.0
    %1383 = vmatpush.xpose.msra.mxu0 0.0
    %1384 = vmatpush.xpose.msra.mxu0 0.0
    %1385 = vmatpush.xpose.msra.mxu0 0.0
    %1386 = vmatpush.xpose.msra.mxu0 %v1369
    %1387 = vmatmul.f32.gmra.mxu0 %v1367
    %v1388 = vpop.f32.mrf.mxu0
    %v1389 = vadd.f32 0.0, %v1388
    %1390 = vdwg.mxu0
    %1391 = vrot.lane.b32.xlu0 %v1304, 96
    %v1392 = vpop.permute.xlu0 %1391
    %v1393 = vsel %vm295, %v1304, 0
    %v1395 = vsel %vm295, %v1392, 0
    %1397 = vmatpush.xpose.msra.mxu0 0.0
    %1398 = vmatpush.xpose.msra.mxu0 0.0
    %1399 = vmatpush.xpose.msra.mxu0 0.0
    %1400 = vmatpush.xpose.msra.mxu0 0.0
    %1401 = vmatpush.xpose.msra.mxu0 0.0
    %1402 = vmatpush.xpose.msra.mxu0 0.0
    %1403 = vmatpush.xpose.msra.mxu0 0.0
    %1404 = vmatpush.xpose.msra.mxu0 0.0
    %1405 = vmatpush.xpose.msra.mxu0 0.0
    %1406 = vmatpush.xpose.msra.mxu0 0.0
    %1407 = vmatpush.xpose.msra.mxu0 0.0
    %1408 = vmatpush.xpose.msra.mxu0 0.0
    %1409 = vmatpush.xpose.msra.mxu0 0.0
    %1410 = vmatpush.xpose.msra.mxu0 0.0
    %1411 = vmatpush.xpose.msra.mxu0 0.0
    %1412 = vmatpush.xpose.msra.mxu0 %v1395
    %1413 = vmatmul.f32.gmra.mxu0 %v1393
    %v1414 = vpop.f32.mrf.mxu0
    %v1415 = vadd.f32 0.0, %v1414
    %1416 = vdwg.mxu0
    %1417 = vrot.lane.b32.xlu0 %v1306, 96
    %v1418 = vpop.permute.xlu0 %1417
    %v1419 = vsel %vm295, %v1306, 0
    %v1421 = vsel %vm295, %v1418, 0
    %1423 = vmatpush.xpose.msra.mxu0 0.0
    %1424 = vmatpush.xpose.msra.mxu0 0.0
    %1425 = vmatpush.xpose.msra.mxu0 0.0
    %1426 = vmatpush.xpose.msra.mxu0 0.0
    %1427 = vmatpush.xpose.msra.mxu0 0.0
    %1428 = vmatpush.xpose.msra.mxu0 0.0
    %1429 = vmatpush.xpose.msra.mxu0 0.0
    %1430 = vmatpush.xpose.msra.mxu0 0.0
    %1431 = vmatpush.xpose.msra.mxu0 0.0
    %1432 = vmatpush.xpose.msra.mxu0 0.0
    %1433 = vmatpush.xpose.msra.mxu0 0.0
    %1434 = vmatpush.xpose.msra.mxu0 0.0
    %1435 = vmatpush.xpose.msra.mxu0 0.0
    %1436 = vmatpush.xpose.msra.mxu0 0.0
    %1437 = vmatpush.xpose.msra.mxu0 0.0
    %1438 = vmatpush.xpose.msra.mxu0 %v1421
    %1439 = vmatmul.f32.gmra.mxu0 %v1419
    %v1440 = vpop.f32.mrf.mxu0
    %v1441 = vadd.f32 0.0, %v1440
    %1442 = vdwg.mxu0
    %1443 = vrot.lane.b32.xlu0 %v1308, 96
    %v1444 = vpop.permute.xlu0 %1443
    %v1445 = vsel %vm295, %v1308, 0
    %v1447 = vsel %vm295, %v1444, 0
    %1449 = vmatpush.xpose.msra.mxu0 0.0
    %1450 = vmatpush.xpose.msra.mxu0 0.0
    %1451 = vmatpush.xpose.msra.mxu0 0.0
    %1452 = vmatpush.xpose.msra.mxu0 0.0
    %1453 = vmatpush.xpose.msra.mxu0 0.0
    %1454 = vmatpush.xpose.msra.mxu0 0.0
    %1455 = vmatpush.xpose.msra.mxu0 0.0
    %1456 = vmatpush.xpose.msra.mxu0 0.0
    %1457 = vmatpush.xpose.msra.mxu0 0.0
    %1458 = vmatpush.xpose.msra.mxu0 0.0
    %1459 = vmatpush.xpose.msra.mxu0 0.0
    %1460 = vmatpush.xpose.msra.mxu0 0.0
    %1461 = vmatpush.xpose.msra.mxu0 0.0
    %1462 = vmatpush.xpose.msra.mxu0 0.0
    %1463 = vmatpush.xpose.msra.mxu0 0.0
    %1464 = vmatpush.xpose.msra.mxu0 %v1447
    %1465 = vmatmul.f32.gmra.mxu0 %v1445
    %v1466 = vpop.f32.mrf.mxu0
    %v1467 = vadd.f32 0.0, %v1466
    %1468 = vdwg.mxu0
    %1469 = vrot.lane.b32.xlu0 %v1310, 96
    %v1470 = vpop.permute.xlu0 %1469
    %v1471 = vsel %vm295, %v1310, 0
    %v1473 = vsel %vm295, %v1470, 0
    %1475 = vmatpush.xpose.msra.mxu0 0.0
    %1476 = vmatpush.xpose.msra.mxu0 0.0
    %1477 = vmatpush.xpose.msra.mxu0 0.0
    %1478 = vmatpush.xpose.msra.mxu0 0.0
    %1479 = vmatpush.xpose.msra.mxu0 0.0
    %1480 = vmatpush.xpose.msra.mxu0 0.0
    %1481 = vmatpush.xpose.msra.mxu0 0.0
    %1482 = vmatpush.xpose.msra.mxu0 0.0
    %1483 = vmatpush.xpose.msra.mxu0 0.0
    %1484 = vmatpush.xpose.msra.mxu0 0.0
    %1485 = vmatpush.xpose.msra.mxu0 0.0
    %1486 = vmatpush.xpose.msra.mxu0 0.0
    %1487 = vmatpush.xpose.msra.mxu0 0.0
    %1488 = vmatpush.xpose.msra.mxu0 0.0
    %1489 = vmatpush.xpose.msra.mxu0 0.0
    %1490 = vmatpush.xpose.msra.mxu0 %v1473
    %1491 = vmatmul.f32.gmra.mxu0 %v1471
    %v1492 = vpop.f32.mrf.mxu0
    %v1493 = vadd.f32 0.0, %v1492
    %1494 = vdwg.mxu0
    %1495 = vrot.lane.b32.xlu0 %v1312, 96
    %v1496 = vpop.permute.xlu0 %1495
    %v1497 = vsel %vm295, %v1312, 0
    %v1499 = vsel %vm295, %v1496, 0
    %1501 = vmatpush.xpose.msra.mxu0 0.0
    %1502 = vmatpush.xpose.msra.mxu0 0.0
    %1503 = vmatpush.xpose.msra.mxu0 0.0
    %1504 = vmatpush.xpose.msra.mxu0 0.0
    %1505 = vmatpush.xpose.msra.mxu0 0.0
    %1506 = vmatpush.xpose.msra.mxu0 0.0
    %1507 = vmatpush.xpose.msra.mxu0 0.0
    %1508 = vmatpush.xpose.msra.mxu0 0.0
    %1509 = vmatpush.xpose.msra.mxu0 0.0
    %1510 = vmatpush.xpose.msra.mxu0 0.0
    %1511 = vmatpush.xpose.msra.mxu0 0.0
    %1512 = vmatpush.xpose.msra.mxu0 0.0
    %1513 = vmatpush.xpose.msra.mxu0 0.0
    %1514 = vmatpush.xpose.msra.mxu0 0.0
    %1515 = vmatpush.xpose.msra.mxu0 0.0
    %1516 = vmatpush.xpose.msra.mxu0 %v1499
    %1517 = vmatmul.f32.gmra.mxu0 %v1497
    %v1518 = vpop.f32.mrf.mxu0
    %v1519 = vadd.f32 0.0, %v1518
    %1520 = vdwg.mxu0
    %v1521 = vsel %vm295, %v1337, -inf
    %1522 = vmax.xlane.f32.xlu0 %v1521
    %v1523 = vpop.xlane.xlu0 %1522
    %v1524 = vsel %vm295, %v1363, -inf
    %1525 = vmax.xlane.f32.xlu0 %v1524
    %v1526 = vpop.xlane.xlu0 %1525
    %v1527 = vsel %vm295, %v1389, -inf
    %1528 = vmax.xlane.f32.xlu0 %v1527
    %v1529 = vpop.xlane.xlu0 %1528
    %v1530 = vsel %vm295, %v1415, -inf
    %1531 = vmax.xlane.f32.xlu0 %v1530
    %v1532 = vpop.xlane.xlu0 %1531
    %v1533 = vsel %vm295, %v1441, -inf
    %1534 = vmax.xlane.f32.xlu0 %v1533
    %v1535 = vpop.xlane.xlu0 %1534
    %v1536 = vsel %vm295, %v1467, -inf
    %1537 = vmax.xlane.f32.xlu0 %v1536
    %v1538 = vpop.xlane.xlu0 %1537
    %v1539 = vsel %vm295, %v1493, -inf
    %1540 = vmax.xlane.f32.xlu0 %v1539
    %v1541 = vpop.xlane.xlu0 %1540
    %v1542 = vsel %vm295, %v1519, -inf
    %1543 = vmax.xlane.f32.xlu0 %v1542
    %v1544 = vpop.xlane.xlu0 %1543
    %v1545 = vsub.f32 %v1337, %v1523
    %v1546 = vsub.f32 %v1363, %v1526
    %v1547 = vsub.f32 %v1389, %v1529
    %v1548 = vsub.f32 %v1415, %v1532
    %v1549 = vsub.f32 %v1441, %v1535
    %v1550 = vsub.f32 %v1467, %v1538
    %v1551 = vsub.f32 %v1493, %v1541
    %v1552 = vsub.f32 %v1519, %v1544
    %v1553 = vmul.f32 %v1545, 1.442695
    %v1554 = vpow.pop %v1553
    %v1555 = vmul.f32 %v1546, 1.442695
    %v1556 = vpow.pop %v1555
    %v1557 = vmul.f32 %v1547, 1.442695
    %v1558 = vpow.pop %v1557
    %v1559 = vmul.f32 %v1548, 1.442695
    %v1560 = vpow.pop %v1559
    %v1561 = vmul.f32 %v1549, 1.442695
    %v1562 = vpow.pop %v1561
    %v1563 = vmul.f32 %v1550, 1.442695
    %v1564 = vpow.pop %v1563
    %v1565 = vmul.f32 %v1551, 1.442695
    %v1566 = vpow.pop %v1565
    %v1567 = vmul.f32 %v1552, 1.442695
    %v1568 = vpow.pop %v1567
    %v1569 = vsel %vm295, %v1554, 0.0
    %1570 = vadd.xlane.f32.xlu0 %v1569
    %v1571 = vpop.xlane.xlu0 %1570
    %v1572 = vsel %vm295, %v1556, 0.0
    %1573 = vadd.xlane.f32.xlu0 %v1572
    %v1574 = vpop.xlane.xlu0 %1573
    %v1575 = vsel %vm295, %v1558, 0.0
    %1576 = vadd.xlane.f32.xlu0 %v1575
    %v1577 = vpop.xlane.xlu0 %1576
    %v1578 = vsel %vm295, %v1560, 0.0
    %1579 = vadd.xlane.f32.xlu0 %v1578
    %v1580 = vpop.xlane.xlu0 %1579
    %v1581 = vsel %vm295, %v1562, 0.0
    %1582 = vadd.xlane.f32.xlu0 %v1581
    %v1583 = vpop.xlane.xlu0 %1582
    %v1584 = vsel %vm295, %v1564, 0.0
    %1585 = vadd.xlane.f32.xlu0 %v1584
    %v1586 = vpop.xlane.xlu0 %1585
    %v1587 = vsel %vm295, %v1566, 0.0
    %1588 = vadd.xlane.f32.xlu0 %v1587
    %v1589 = vpop.xlane.xlu0 %1588
    %v1590 = vsel %vm295, %v1568, 0.0
    %1591 = vadd.xlane.f32.xlu0 %v1590
    %v1592 = vpop.xlane.xlu0 %1591
    %v1593 = vrcp.pop %v1571
    %v1594 = vmul.f32 %v1571, %v1593
    %v1595 = vsub.f32 1.0, %v1594
    %v1596 = vmul.f32 %v1593, %v1595
    %v1597 = vadd.f32 %v1593, %v1596
    %vm1598 = vweird.f32 %v1571
    %vm1599 = vweird.f32 %v1593
    %vm1600 = vmor %vm1598, %vm1599
    %v1601 = vsel %vm1600, %v1593, %v1597
    %v1602 = vand.u32 2147483647, %v1571
    %vm1603 = vcmp.eq.f32.partialorder %v1602, 8.507059e+37
    %v1604 = vand.u32 %v1571, 2147483648
    %v1605 = vor.u32 1.1754944e-38, %v1604
    %v1606 = vsel %vm1603, %v1605, %v1601
    %v1607 = vmul.f32 %v1554, %v1606
    %v1608 = vrcp.pop %v1574
    %v1609 = vmul.f32 %v1574, %v1608
    %v1610 = vsub.f32 1.0, %v1609
    %v1611 = vmul.f32 %v1608, %v1610
    %v1612 = vadd.f32 %v1608, %v1611
    %vm1613 = vweird.f32 %v1574
    %vm1614 = vweird.f32 %v1608
    %vm1615 = vmor %vm1613, %vm1614
    %v1616 = vsel %vm1615, %v1608, %v1612
    %v1617 = vand.u32 2147483647, %v1574
    %vm1618 = vcmp.eq.f32.partialorder %v1617, 8.507059e+37
    %v1619 = vand.u32 %v1574, 2147483648
    %v1620 = vor.u32 1.1754944e-38, %v1619
    %v1621 = vsel %vm1618, %v1620, %v1616
    %v1622 = vmul.f32 %v1556, %v1621
    %v1623 = vrcp.pop %v1577
    %v1624 = vmul.f32 %v1577, %v1623
    %v1625 = vsub.f32 1.0, %v1624
    %v1626 = vmul.f32 %v1623, %v1625
    %v1627 = vadd.f32 %v1623, %v1626
    %vm1628 = vweird.f32 %v1577
    %vm1629 = vweird.f32 %v1623
    %vm1630 = vmor %vm1628, %vm1629
    %v1631 = vsel %vm1630, %v1623, %v1627
    %v1632 = vand.u32 2147483647, %v1577
    %vm1633 = vcmp.eq.f32.partialorder %v1632, 8.507059e+37
    %v1634 = vand.u32 %v1577, 2147483648
    %v1635 = vor.u32 1.1754944e-38, %v1634
    %v1636 = vsel %vm1633, %v1635, %v1631
    %v1637 = vmul.f32 %v1558, %v1636
    %v1638 = vrcp.pop %v1580
    %v1639 = vmul.f32 %v1580, %v1638
    %v1640 = vsub.f32 1.0, %v1639
    %v1641 = vmul.f32 %v1638, %v1640
    %v1642 = vadd.f32 %v1638, %v1641
    %vm1643 = vweird.f32 %v1580
    %vm1644 = vweird.f32 %v1638
    %vm1645 = vmor %vm1643, %vm1644
    %v1646 = vsel %vm1645, %v1638, %v1642
    %v1647 = vand.u32 2147483647, %v1580
    %vm1648 = vcmp.eq.f32.partialorder %v1647, 8.507059e+37
    %v1649 = vand.u32 %v1580, 2147483648
    %v1650 = vor.u32 1.1754944e-38, %v1649
    %v1651 = vsel %vm1648, %v1650, %v1646
    %v1652 = vmul.f32 %v1560, %v1651
    %v1653 = vrcp.pop %v1583
    %v1654 = vmul.f32 %v1583, %v1653
    %v1655 = vsub.f32 1.0, %v1654
    %v1656 = vmul.f32 %v1653, %v1655
    %v1657 = vadd.f32 %v1653, %v1656
    %vm1658 = vweird.f32 %v1583
    %vm1659 = vweird.f32 %v1653
    %vm1660 = vmor %vm1658, %vm1659
    %v1661 = vsel %vm1660, %v1653, %v1657
    %v1662 = vand.u32 2147483647, %v1583
    %vm1663 = vcmp.eq.f32.partialorder %v1662, 8.507059e+37
    %v1664 = vand.u32 %v1583, 2147483648
    %v1665 = vor.u32 1.1754944e-38, %v1664
    %v1666 = vsel %vm1663, %v1665, %v1661
    %v1667 = vmul.f32 %v1562, %v1666
    %v1668 = vrcp.pop %v1586
    %v1669 = vmul.f32 %v1586, %v1668
    %v1670 = vsub.f32 1.0, %v1669
    %v1671 = vmul.f32 %v1668, %v1670
    %v1672 = vadd.f32 %v1668, %v1671
    %vm1673 = vweird.f32 %v1586
    %vm1674 = vweird.f32 %v1668
    %vm1675 = vmor %vm1673, %vm1674
    %v1676 = vsel %vm1675, %v1668, %v1672
    %v1677 = vand.u32 2147483647, %v1586
    %vm1678 = vcmp.eq.f32.partialorder %v1677, 8.507059e+37
    %v1679 = vand.u32 %v1586, 2147483648
    %v1680 = vor.u32 1.1754944e-38, %v1679
    %v1681 = vsel %vm1678, %v1680, %v1676
    %v1682 = vmul.f32 %v1564, %v1681
    %v1683 = vrcp.pop %v1589
    %v1684 = vmul.f32 %v1589, %v1683
    %v1685 = vsub.f32 1.0, %v1684
    %v1686 = vmul.f32 %v1683, %v1685
    %v1687 = vadd.f32 %v1683, %v1686
    %vm1688 = vweird.f32 %v1589
    %vm1689 = vweird.f32 %v1683
    %vm1690 = vmor %vm1688, %vm1689
    %v1691 = vsel %vm1690, %v1683, %v1687
    %v1692 = vand.u32 2147483647, %v1589
    %vm1693 = vcmp.eq.f32.partialorder %v1692, 8.507059e+37
    %v1694 = vand.u32 %v1589, 2147483648
    %v1695 = vor.u32 1.1754944e-38, %v1694
    %v1696 = vsel %vm1693, %v1695, %v1691
    %v1697 = vmul.f32 %v1566, %v1696
    %v1698 = vrcp.pop %v1592
    %v1699 = vmul.f32 %v1592, %v1698
    %v1700 = vsub.f32 1.0, %v1699
    %v1701 = vmul.f32 %v1698, %v1700
    %v1702 = vadd.f32 %v1698, %v1701
    %vm1703 = vweird.f32 %v1592
    %vm1704 = vweird.f32 %v1698
    %vm1705 = vmor %vm1703, %vm1704
    %v1706 = vsel %vm1705, %v1698, %v1702
    %v1707 = vand.u32 2147483647, %v1592
    %vm1708 = vcmp.eq.f32.partialorder %v1707, 8.507059e+37
    %v1709 = vand.u32 %v1592, 2147483648
    %v1710 = vor.u32 1.1754944e-38, %v1709
    %v1711 = vsel %vm1708, %v1710, %v1706
    %v1712 = vmul.f32 %v1568, %v1711
    %1713 = vrot.lane.b32.xlu0 %v1294, 64
    %v1714 = vpop.permute.xlu0 %1713
    %v1717 = vsel %vm295, %v1607, 0
    %1719 = vmatpush.msra.mxu0 0.0
    %1720 = vmatpush.msra.mxu0 0.0
    %1721 = vmatpush.msra.mxu0 0.0
    %1722 = vmatpush.msra.mxu0 0.0
    %1723 = vmatpush.msra.mxu0 0.0
    %1724 = vmatpush.msra.mxu0 0.0
    %1725 = vmatpush.msra.mxu0 0.0
    %1726 = vmatpush.msra.mxu0 0.0
    %1727 = vmatpush.msra.mxu0 0.0
    %1728 = vmatpush.msra.mxu0 0.0
    %1729 = vmatpush.msra.mxu0 0.0
    %1730 = vmatpush.msra.mxu0 0.0
    %1731 = vmatpush.msra.mxu0 0.0
    %1732 = vmatpush.msra.mxu0 0.0
    %1733 = vmatpush.msra.mxu0 0.0
    %1734 = vmatpush.msra.mxu0 %v1714
    %1735 = vmatmul.f32.gmra.mxu0 %v1717
    %v1736 = vpop.f32.mrf.mxu0
    %v1737 = vadd.f32 0.0, %v1736
    %1738 = vdwg.mxu0
    %1739 = vrot.lane.b32.xlu0 %v1297, 64
    %v1740 = vpop.permute.xlu0 %1739
    %v1743 = vsel %vm295, %v1622, 0
    %1745 = vmatpush.msra.mxu0 0.0
    %1746 = vmatpush.msra.mxu0 0.0
    %1747 = vmatpush.msra.mxu0 0.0
    %1748 = vmatpush.msra.mxu0 0.0
    %1749 = vmatpush.msra.mxu0 0.0
    %1750 = vmatpush.msra.mxu0 0.0
    %1751 = vmatpush.msra.mxu0 0.0
    %1752 = vmatpush.msra.mxu0 0.0
    %1753 = vmatpush.msra.mxu0 0.0
    %1754 = vmatpush.msra.mxu0 0.0
    %1755 = vmatpush.msra.mxu0 0.0
    %1756 = vmatpush.msra.mxu0 0.0
    %1757 = vmatpush.msra.mxu0 0.0
    %1758 = vmatpush.msra.mxu0 0.0
    %1759 = vmatpush.msra.mxu0 0.0
    %1760 = vmatpush.msra.mxu0 %v1740
    %1761 = vmatmul.f32.gmra.mxu0 %v1743
    %v1762 = vpop.f32.mrf.mxu0
    %v1763 = vadd.f32 0.0, %v1762
    %1764 = vdwg.mxu0
    %1765 = vrot.lane.b32.xlu0 %v1302, 64
    %v1766 = vpop.permute.xlu0 %1765
    %v1769 = vsel %vm295, %v1637, 0
    %1771 = vmatpush.msra.mxu0 0.0
    %1772 = vmatpush.msra.mxu0 0.0
    %1773 = vmatpush.msra.mxu0 0.0
    %1774 = vmatpush.msra.mxu0 0.0
    %1775 = vmatpush.msra.mxu0 0.0
    %1776 = vmatpush.msra.mxu0 0.0
    %1777 = vmatpush.msra.mxu0 0.0
    %1778 = vmatpush.msra.mxu0 0.0
    %1779 = vmatpush.msra.mxu0 0.0
    %1780 = vmatpush.msra.mxu0 0.0
    %1781 = vmatpush.msra.mxu0 0.0
    %1782 = vmatpush.msra.mxu0 0.0
    %1783 = vmatpush.msra.mxu0 0.0
    %1784 = vmatpush.msra.mxu0 0.0
    %1785 = vmatpush.msra.mxu0 0.0
    %1786 = vmatpush.msra.mxu0 %v1766
    %1787 = vmatmul.f32.gmra.mxu0 %v1769
    %v1788 = vpop.f32.mrf.mxu0
    %v1789 = vadd.f32 0.0, %v1788
    %1790 = vdwg.mxu0
    %1791 = vrot.lane.b32.xlu0 %v1304, 64
    %v1792 = vpop.permute.xlu0 %1791
    %v1795 = vsel %vm295, %v1652, 0
    %1797 = vmatpush.msra.mxu0 0.0
    %1798 = vmatpush.msra.mxu0 0.0
    %1799 = vmatpush.msra.mxu0 0.0
    %1800 = vmatpush.msra.mxu0 0.0
    %1801 = vmatpush.msra.mxu0 0.0
    %1802 = vmatpush.msra.mxu0 0.0
    %1803 = vmatpush.msra.mxu0 0.0
    %1804 = vmatpush.msra.mxu0 0.0
    %1805 = vmatpush.msra.mxu0 0.0
    %1806 = vmatpush.msra.mxu0 0.0
    %1807 = vmatpush.msra.mxu0 0.0
    %1808 = vmatpush.msra.mxu0 0.0
    %1809 = vmatpush.msra.mxu0 0.0
    %1810 = vmatpush.msra.mxu0 0.0
    %1811 = vmatpush.msra.mxu0 0.0
    %1812 = vmatpush.msra.mxu0 %v1792
    %1813 = vmatmul.f32.gmra.mxu0 %v1795
    %v1814 = vpop.f32.mrf.mxu0
    %v1815 = vadd.f32 0.0, %v1814
    %1816 = vdwg.mxu0
    %1817 = vrot.lane.b32.xlu0 %v1306, 64
    %v1818 = vpop.permute.xlu0 %1817
    %v1821 = vsel %vm295, %v1667, 0
    %1823 = vmatpush.msra.mxu0 0.0
    %1824 = vmatpush.msra.mxu0 0.0
    %1825 = vmatpush.msra.mxu0 0.0
    %1826 = vmatpush.msra.mxu0 0.0
    %1827 = vmatpush.msra.mxu0 0.0
    %1828 = vmatpush.msra.mxu0 0.0
    %1829 = vmatpush.msra.mxu0 0.0
    %1830 = vmatpush.msra.mxu0 0.0
    %1831 = vmatpush.msra.mxu0 0.0
    %1832 = vmatpush.msra.mxu0 0.0
    %1833 = vmatpush.msra.mxu0 0.0
    %1834 = vmatpush.msra.mxu0 0.0
    %1835 = vmatpush.msra.mxu0 0.0
    %1836 = vmatpush.msra.mxu0 0.0
    %1837 = vmatpush.msra.mxu0 0.0
    %1838 = vmatpush.msra.mxu0 %v1818
    %1839 = vmatmul.f32.gmra.mxu0 %v1821
    %v1840 = vpop.f32.mrf.mxu0
    %v1841 = vadd.f32 0.0, %v1840
    %1842 = vdwg.mxu0
    %1843 = vrot.lane.b32.xlu0 %v1308, 64
    %v1844 = vpop.permute.xlu0 %1843
    %v1847 = vsel %vm295, %v1682, 0
    %1849 = vmatpush.msra.mxu0 0.0
    %1850 = vmatpush.msra.mxu0 0.0
    %1851 = vmatpush.msra.mxu0 0.0
    %1852 = vmatpush.msra.mxu0 0.0
    %1853 = vmatpush.msra.mxu0 0.0
    %1854 = vmatpush.msra.mxu0 0.0
    %1855 = vmatpush.msra.mxu0 0.0
    %1856 = vmatpush.msra.mxu0 0.0
    %1857 = vmatpush.msra.mxu0 0.0
    %1858 = vmatpush.msra.mxu0 0.0
    %1859 = vmatpush.msra.mxu0 0.0
    %1860 = vmatpush.msra.mxu0 0.0
    %1861 = vmatpush.msra.mxu0 0.0
    %1862 = vmatpush.msra.mxu0 0.0
    %1863 = vmatpush.msra.mxu0 0.0
    %1864 = vmatpush.msra.mxu0 %v1844
    %1865 = vmatmul.f32.gmra.mxu0 %v1847
    %v1866 = vpop.f32.mrf.mxu0
    %v1867 = vadd.f32 0.0, %v1866
    %1868 = vdwg.mxu0
    %1869 = vrot.lane.b32.xlu0 %v1310, 64
    %v1870 = vpop.permute.xlu0 %1869
    %v1873 = vsel %vm295, %v1697, 0
    %1875 = vmatpush.msra.mxu0 0.0
    %1876 = vmatpush.msra.mxu0 0.0
    %1877 = vmatpush.msra.mxu0 0.0
    %1878 = vmatpush.msra.mxu0 0.0
    %1879 = vmatpush.msra.mxu0 0.0
    %1880 = vmatpush.msra.mxu0 0.0
    %1881 = vmatpush.msra.mxu0 0.0
    %1882 = vmatpush.msra.mxu0 0.0
    %1883 = vmatpush.msra.mxu0 0.0
    %1884 = vmatpush.msra.mxu0 0.0
    %1885 = vmatpush.msra.mxu0 0.0
    %1886 = vmatpush.msra.mxu0 0.0
    %1887 = vmatpush.msra.mxu0 0.0
    %1888 = vmatpush.msra.mxu0 0.0
    %1889 = vmatpush.msra.mxu0 0.0
    %1890 = vmatpush.msra.mxu0 %v1870
    %1891 = vmatmul.f32.gmra.mxu0 %v1873
    %v1892 = vpop.f32.mrf.mxu0
    %v1893 = vadd.f32 0.0, %v1892
    %1894 = vdwg.mxu0
    %1895 = vrot.lane.b32.xlu0 %v1312, 64
    %v1896 = vpop.permute.xlu0 %1895
    %v1899 = vsel %vm295, %v1712, 0
    %1901 = vmatpush.msra.mxu0 0.0
    %1902 = vmatpush.msra.mxu0 0.0
    %1903 = vmatpush.msra.mxu0 0.0
    %1904 = vmatpush.msra.mxu0 0.0
    %1905 = vmatpush.msra.mxu0 0.0
    %1906 = vmatpush.msra.mxu0 0.0
    %1907 = vmatpush.msra.mxu0 0.0
    %1908 = vmatpush.msra.mxu0 0.0
    %1909 = vmatpush.msra.mxu0 0.0
    %1910 = vmatpush.msra.mxu0 0.0
    %1911 = vmatpush.msra.mxu0 0.0
    %1912 = vmatpush.msra.mxu0 0.0
    %1913 = vmatpush.msra.mxu0 0.0
    %1914 = vmatpush.msra.mxu0 0.0
    %1915 = vmatpush.msra.mxu0 0.0
    %1916 = vmatpush.msra.mxu0 %v1896
    %1917 = vmatmul.f32.gmra.mxu0 %v1899
    %v1918 = vpop.f32.mrf.mxu0
    %v1919 = vadd.f32 0.0, %v1918
    %1920 = vdwg.mxu0
    %1923 = vrot.lane.b32.xlu0 %v1789, 8
    %v1924 = vpop.permute.xlu0 %1923
    %1925 = vrot.lane.b32.xlu0 %v1815, 8
    %v1926 = vpop.permute.xlu0 %1925
    %1931 = vrot.lane.b32.xlu0 %v1841, 16
    %v1932 = vpop.permute.xlu0 %1931
    %1933 = vrot.lane.b32.xlu0 %v1867, 16
    %v1934 = vpop.permute.xlu0 %1933
    %1939 = vrot.lane.b32.xlu0 %v1893, 24
    %v1940 = vpop.permute.xlu0 %1939
    %1941 = vrot.lane.b32.xlu0 %v1919, 24
    %v1942 = vpop.permute.xlu0 %1941
    %v1945 = vsel %vm295, %v1737, %v1924
    %v1946 = vsel %vm295, %v1763, %v1926
    %v1947 = vsel %vm145, %v1945, %v1932
    %v1948 = vsel %vm145, %v1946, %v1934
    %v1949 = vsel %vm930, %v1947, %v1940
    %v1950 = vsel %vm930, %v1948, %v1942
    %s1951 = scalar_lea.vmem %s8, 32
    %v1952 = vld [vmem:[%s1951] sm:$0xff]
    %v1953 = vld [vmem:[%s1951 + $0x8] sm:$0xff]
    %v1954 = vld [vmem:[%s1951 + $0x10] sm:$0xff]
    %v1955 = vld [vmem:[%s1951 + $0x18] sm:$0xff]
    %s1956 = scalar_lea.vmem %s9, 1
    %v1957 = vld [vmem:[%s1956] sm:$0x1]
    %v1959 = vperm.slane %v1957, 0
    %v1962 = vsel %vm180, %v1949, 0
    %v1965 = vsel %vm180, %v1950, 0
    %1967 = vmatpush.msra.mxu0 0.0
    %1968 = vmatpush.msra.mxu0 0.0
    %1969 = vmatpush.msra.mxu0 0.0
    %1970 = vmatpush.msra.mxu0 0.0
    %1971 = vmatpush.msra.mxu0 0.0
    %1972 = vmatpush.msra.mxu0 0.0
    %1973 = vmatpush.msra.mxu0 0.0
    %1974 = vmatpush.msra.mxu0 0.0
    %1975 = vmatpush.msra.mxu0 0.0
    %1976 = vmatpush.msra.mxu0 0.0
    %1977 = vmatpush.msra.mxu0 0.0
    %1978 = vmatpush.msra.mxu0 0.0
    %1979 = vmatpush.msra.mxu0 %v1955
    %1980 = vmatpush.msra.mxu0 %v1954
    %1981 = vmatpush.msra.mxu0 %v1953
    %1982 = vmatpush.msra.mxu0 %v1952
    %1983 = vmatmul.f32.gmra.mxu0 %v1962
    %v1984 = vpop.f32.mrf.mxu0
    %v1985 = vadd.f32 %v1959, %v1984
    %1986 = vmatmul.f32.gmra.mxu0 %v1965
    %v1987 = vpop.f32.mrf.mxu0
    %v1988 = vadd.f32 %v1959, %v1987
    %1989 = vdwg.mxu0
    %v1990 = vadd.f32 %v1985, %v1258
    %v1991 = vadd.f32 %v1988, %v1259
    %s1992 = scalar_lea.vmem %s10, 1
    %v1993 = vld [vmem:[%s1992] sm:$0x1]
    %s1994 = scalar_lea.vmem %s11, 1
    %v1995 = vld [vmem:[%s1994] sm:$0x1]
    %v1996 = vsel %vm180, %v1990, 0.0
    %1997 = vadd.xlane.f32.xlu0 %v1996
    %v1998 = vpop.xlane.xlu0 %1997
    %v1999 = vsel %vm180, %v1991, 0.0
    %2000 = vadd.xlane.f32.xlu0 %v1999
    %v2001 = vpop.xlane.xlu0 %2000
    %v2002 = vmul.f32 %v1998, %v193
    %v2003 = vmul.f32 %v2001, %v193
    %v2004 = vsub.f32 %v1990, %v2002
    %v2005 = vsub.f32 %v1991, %v2003
    %v2006 = vmul.f32 %v2004, %v2004
    %v2007 = vmul.f32 %v2005, %v2005
    %v2008 = vsel %vm180, %v2006, 0.0
    %2009 = vadd.xlane.f32.xlu0 %v2008
    %v2010 = vpop.xlane.xlu0 %2009
    %v2011 = vsel %vm180, %v2007, 0.0
    %2012 = vadd.xlane.f32.xlu0 %v2011
    %v2013 = vpop.xlane.xlu0 %2012
    %v2014 = vmul.f32 %v2010, %v193
    %v2015 = vmul.f32 %v2013, %v193
    %v2016 = vadd.f32 %v2014, 1e-12
    %v2017 = vadd.f32 %v2015, 1e-12
    %v2018 = vrsqrt.pop %v2016
    %v2019 = vmul.f32 %v2018, %v2016
    %v2020 = vmul.f32 %v2019, %v2018
    %v2021 = vmul.f32 0.5, %v2020
    %v2022 = vsub.f32 1.5, %v2021
    %v2023 = vmul.f32 %v2018, %v2022
    %vm2024 = vweird.f32 %v2016
    %vm2025 = vweird.f32 %v2018
    %vm2026 = vmor %vm2024, %vm2025
    %v2027 = vsel %vm2026, %v2018, %v2023
    %v2028 = vrsqrt.pop %v2017
    %v2029 = vmul.f32 %v2028, %v2017
    %v2030 = vmul.f32 %v2029, %v2028
    %v2031 = vmul.f32 0.5, %v2030
    %v2032 = vsub.f32 1.5, %v2031
    %v2033 = vmul.f32 %v2028, %v2032
    %vm2034 = vweird.f32 %v2017
    %vm2035 = vweird.f32 %v2028
    %vm2036 = vmor %vm2034, %vm2035
    %v2037 = vsel %vm2036, %v2028, %v2033
    %v2038 = vmul.f32 %v2004, %v2027
    %v2039 = vmul.f32 %v2005, %v2037
    %v2041 = vperm.slane %v1993, 0
    %v2043 = vmul.f32 %v2038, %v2041
    %v2044 = vmul.f32 %v2039, %v2041
    %v2046 = vperm.slane %v1995, 0
    %v2048 = vadd.f32 %v2043, %v2046
    %v2049 = vadd.f32 %v2044, %v2046
    %s2050 = scalar_lea.vmem %s12, 32
    %v2051 = vld [vmem:[%s2050] sm:$0xff]
    %v2052 = vld [vmem:[%s2050 + $0x8] sm:$0xff]
    %v2053 = vld [vmem:[%s2050 + $0x10] sm:$0xff]
    %v2054 = vld [vmem:[%s2050 + $0x18] sm:$0xff]
    %s2055 = scalar_lea.vmem %s13, 1
    %v2056 = vld [vmem:[%s2055] sm:$0x1]
    %v2058 = vperm.slane %v2056, 0
    %v2061 = vsel %vm180, %v2048, 0
    %v2064 = vsel %vm180, %v2049, 0
    %2066 = vmatpush.msra.mxu0 0.0
    %2067 = vmatpush.msra.mxu0 0.0
    %2068 = vmatpush.msra.mxu0 0.0
    %2069 = vmatpush.msra.mxu0 0.0
    %2070 = vmatpush.msra.mxu0 0.0
    %2071 = vmatpush.msra.mxu0 0.0
    %2072 = vmatpush.msra.mxu0 0.0
    %2073 = vmatpush.msra.mxu0 0.0
    %2074 = vmatpush.msra.mxu0 0.0
    %2075 = vmatpush.msra.mxu0 0.0
    %2076 = vmatpush.msra.mxu0 0.0
    %2077 = vmatpush.msra.mxu0 0.0
    %2078 = vmatpush.msra.mxu0 %v2054
    %2079 = vmatpush.msra.mxu0 %v2053
    %2080 = vmatpush.msra.mxu0 %v2052
    %2081 = vmatpush.msra.mxu0 %v2051
    %2082 = vmatmul.f32.gmra.mxu0 %v2061
    %v2083 = vpop.f32.mrf.mxu0
    %v2084 = vadd.f32 %v2058, %v2083
    %2085 = vmatmul.f32.gmra.mxu0 %v2064
    %v2086 = vpop.f32.mrf.mxu0
    %v2087 = vadd.f32 %v2058, %v2086
    %2088 = vdwg.mxu0
    %v2089 = vmul.f32 %v2084, 0.5
    %v2090 = vmul.f32 %v2087, 0.5
    %v2091 = vmul.f32 %v2084, %v1073
    %v2092 = vmul.f32 %v2087, %v1073
    %v2093 = vmul.f32 %v2091, %v2091
    %v2094 = vmin.f32 16.0, %v2093
    %v2095 = vmul.f32 %v2094, 2.1237322e-06
    %v2096 = vadd.f32 %v2095, 0.00028619796
    %v2097 = vmul.f32 %v2094, %v2096
    %v2098 = vadd.f32 %v2097, 0.0036580483
    %v2099 = vmul.f32 %v2094, %v2098
    %v2100 = vadd.f32 %v2099, 0.05243302
    %v2101 = vmul.f32 %v2094, %v2100
    %v2102 = vadd.f32 %v2101, 0.18741608
    %v2103 = vmul.f32 %v2094, %v2102
    %v2104 = vadd.f32 %v2103, 1.1283791
    %v2105 = vmul.f32 %v2091, %v2104
    %v2106 = vmul.f32 %v2094, 3.8918573e-05
    %v2107 = vadd.f32 %v2106, 0.001143296
    %v2108 = vmul.f32 %v2094, %v2107
    %v2109 = vadd.f32 %v2108, 0.014752088
    %v2110 = vmul.f32 %v2094, %v2109
    %v2111 = vadd.f32 %v2110, 0.112945676
    %v2112 = vmul.f32 %v2094, %v2111
    %v2113 = vadd.f32 %v2112, 0.4994258
    %v2114 = vmul.f32 %v2094, %v2113
    %v2115 = vadd.f32 %v2114, 1.0
    %v2116 = vrcp.pop %v2115
    %v2117 = vmul.f32 %v2115, %v2116
    %v2118 = vsub.f32 1.0, %v2117
    %v2119 = vmul.f32 %v2116, %v2118
    %v2120 = vadd.f32 %v2116, %v2119
    %vm2121 = vweird.f32 %v2115
    %vm2122 = vweird.f32 %v2116
    %vm2123 = vmor %vm2121, %vm2122
    %v2124 = vsel %vm2123, %v2116, %v2120
    %v2125 = vand.u32 2147483647, %v2115
    %vm2126 = vcmp.eq.f32.partialorder %v2125, 8.507059e+37
    %v2127 = vand.u32 %v2115, 2147483648
    %v2128 = vor.u32 1.1754944e-38, %v2127
    %v2129 = vsel %vm2126, %v2128, %v2124
    %v2130 = vmul.f32 %v2105, %v2129
    %v2131 = vmin.f32 %v2130, 1.0
    %v2132 = vmax.f32 %v2131, -1.0
    %v2133 = vmul.f32 %v2092, %v2092
    %v2134 = vmin.f32 16.0, %v2133
    %v2135 = vmul.f32 %v2134, 2.1237322e-06
    %v2136 = vadd.f32 %v2135, 0.00028619796
    %v2137 = vmul.f32 %v2134, %v2136
    %v2138 = vadd.f32 %v2137, 0.0036580483
    %v2139 = vmul.f32 %v2134, %v2138
    %v2140 = vadd.f32 %v2139, 0.05243302
    %v2141 = vmul.f32 %v2134, %v2140
    %v2142 = vadd.f32 %v2141, 0.18741608
    %v2143 = vmul.f32 %v2134, %v2142
    %v2144 = vadd.f32 %v2143, 1.1283791
    %v2145 = vmul.f32 %v2092, %v2144
    %v2146 = vmul.f32 %v2134, 3.8918573e-05
    %v2147 = vadd.f32 %v2146, 0.001143296
    %v2148 = vmul.f32 %v2134, %v2147
    %v2149 = vadd.f32 %v2148, 0.014752088
    %v2150 = vmul.f32 %v2134, %v2149
    %v2151 = vadd.f32 %v2150, 0.112945676
    %v2152 = vmul.f32 %v2134, %v2151
    %v2153 = vadd.f32 %v2152, 0.4994258
    %v2154 = vmul.f32 %v2134, %v2153
    %v2155 = vadd.f32 %v2154, 1.0
    %v2156 = vrcp.pop %v2155
    %v2157 = vmul.f32 %v2155, %v2156
    %v2158 = vsub.f32 1.0, %v2157
    %v2159 = vmul.f32 %v2156, %v2158
    %v2160 = vadd.f32 %v2156, %v2159
    %vm2161 = vweird.f32 %v2155
    %vm2162 = vweird.f32 %v2156
    %vm2163 = vmor %vm2161, %vm2162
    %v2164 = vsel %vm2163, %v2156, %v2160
    %v2165 = vand.u32 2147483647, %v2155
    %vm2166 = vcmp.eq.f32.partialorder %v2165, 8.507059e+37
    %v2167 = vand.u32 %v2155, 2147483648
    %v2168 = vor.u32 1.1754944e-38, %v2167
    %v2169 = vsel %vm2166, %v2168, %v2164
    %v2170 = vmul.f32 %v2145, %v2169
    %v2171 = vmin.f32 %v2170, 1.0
    %v2172 = vmax.f32 %v2171, -1.0
    %v2173 = vadd.f32 %v2132, 1.0
    %v2174 = vadd.f32 %v2172, 1.0
    %v2175 = vmul.f32 %v2089, %v2173
    %v2176 = vmul.f32 %v2090, %v2174
    %s2177 = scalar_lea.vmem %s14, 64
    %v2178 = vld [vmem:[%s2177] sm:$0xff]
    %v2179 = vld [vmem:[%s2177 + $0x8] sm:$0xff]
    %v2180 = vld [vmem:[%s2177 + $0x10] sm:$0xff]
    %v2181 = vld [vmem:[%s2177 + $0x18] sm:$0xff]
    %v2182 = vld [vmem:[%s2177 + $0x20] sm:$0xff]
    %v2183 = vld [vmem:[%s2177 + $0x28] sm:$0xff]
    %v2184 = vld [vmem:[%s2177 + $0x30] sm:$0xff]
    %v2185 = vld [vmem:[%s2177 + $0x38] sm:$0xff]
    %s2186 = scalar_lea.vmem %s15, 1
    %v2187 = vld [vmem:[%s2186] sm:$0x1]
    %v2189 = vperm.slane %v2187, 0
    %v2192 = vsel %vm1172, %v2175, 0
    %v2195 = vsel %vm1172, %v2176, 0
    %2197 = vmatpush.msra.mxu0 0.0
    %2198 = vmatpush.msra.mxu0 0.0
    %2199 = vmatpush.msra.mxu0 0.0
    %2200 = vmatpush.msra.mxu0 0.0
    %2201 = vmatpush.msra.mxu0 0.0
    %2202 = vmatpush.msra.mxu0 0.0
    %2203 = vmatpush.msra.mxu0 0.0
    %2204 = vmatpush.msra.mxu0 0.0
    %2205 = vmatpush.msra.mxu0 %v2185
    %2206 = vmatpush.msra.mxu0 %v2184
    %2207 = vmatpush.msra.mxu0 %v2183
    %2208 = vmatpush.msra.mxu0 %v2182
    %2209 = vmatpush.msra.mxu0 %v2181
    %2210 = vmatpush.msra.mxu0 %v2180
    %2211 = vmatpush.msra.mxu0 %v2179
    %2212 = vmatpush.msra.mxu0 %v2178
    %2213 = vmatmul.f32.gmra.mxu0 %v2192
    %v2214 = vpop.f32.mrf.mxu0
    %v2215 = vadd.f32 %v2189, %v2214
    %2216 = vmatmul.f32.gmra.mxu0 %v2195
    %v2217 = vpop.f32.mrf.mxu0
    %v2218 = vadd.f32 %v2189, %v2217
    %2219 = vdwg.mxu0
    %v2220 = vadd.f32 %v2215, %v2048
    %v2221 = vadd.f32 %v2218, %v2049
    %s2222 = scalar_lea.vmem %s16, 1
    %v2223 = vld [vmem:[%s2222] sm:$0x1]
    %s2224 = scalar_lea.vmem [#allocation7], 1
    %v2225 = vld [vmem:[%s2224] sm:$0x1]
    %v2226 = vsel %vm180, %v2220, 0.0
    %2227 = vadd.xlane.f32.xlu0 %v2226
    %v2228 = vpop.xlane.xlu0 %2227
    %v2229 = vsel %vm180, %v2221, 0.0
    %2230 = vadd.xlane.f32.xlu0 %v2229
    %v2231 = vpop.xlane.xlu0 %2230
    %v2232 = vmul.f32 %v2228, %v193
    %v2233 = vmul.f32 %v2231, %v193
    %v2234 = vsub.f32 %v2220, %v2232
    %v2235 = vsub.f32 %v2221, %v2233
    %v2236 = vmul.f32 %v2234, %v2234
    %v2237 = vmul.f32 %v2235, %v2235
    %v2238 = vsel %vm180, %v2236, 0.0
    %2239 = vadd.xlane.f32.xlu0 %v2238
    %v2240 = vpop.xlane.xlu0 %2239
    %v2241 = vsel %vm180, %v2237, 0.0
    %2242 = vadd.xlane.f32.xlu0 %v2241
    %v2243 = vpop.xlane.xlu0 %2242
    %v2244 = vmul.f32 %v2240, %v193
    %v2245 = vmul.f32 %v2243, %v193
    %v2246 = vadd.f32 %v2244, 1e-12
    %v2247 = vadd.f32 %v2245, 1e-12
    %v2248 = vrsqrt.pop %v2246
    %v2249 = vmul.f32 %v2248, %v2246
    %v2250 = vmul.f32 %v2249, %v2248
    %v2251 = vmul.f32 0.5, %v2250
    %v2252 = vsub.f32 1.5, %v2251
    %v2253 = vmul.f32 %v2248, %v2252
    %vm2254 = vweird.f32 %v2246
    %vm2255 = vweird.f32 %v2248
    %vm2256 = vmor %vm2254, %vm2255
    %v2257 = vsel %vm2256, %v2248, %v2253
    %v2258 = vrsqrt.pop %v2247
    %v2259 = vmul.f32 %v2258, %v2247
    %v2260 = vmul.f32 %v2259, %v2258
    %v2261 = vmul.f32 0.5, %v2260
    %v2262 = vsub.f32 1.5, %v2261
    %v2263 = vmul.f32 %v2258, %v2262
    %vm2264 = vweird.f32 %v2247
    %vm2265 = vweird.f32 %v2258
    %vm2266 = vmor %vm2264, %vm2265
    %v2267 = vsel %vm2266, %v2258, %v2263
    %v2268 = vmul.f32 %v2234, %v2257
    %v2269 = vmul.f32 %v2235, %v2267
    %v2271 = vperm.slane %v2223, 0
    %v2273 = vmul.f32 %v2268, %v2271
    %v2274 = vmul.f32 %v2269, %v2271
    %v2276 = vperm.slane %v2225, 0
    %v2278 = vadd.f32 %v2273, %v2276
    %v2279 = vadd.f32 %v2274, %v2276
    %v2280 = vld [vmem:[%s18] sm:$0xff]
    %v2281 = vld [vmem:[%s18 + $0x8] sm:$0xff]
    %v2282 = vld [vmem:[%s18 + $0x10] sm:$0xff]
    %v2283 = vld [vmem:[%s18 + $0x18] sm:$0xff]
    %v2284 = vld [vmem:[#allocation9] sm:$0x1]
    %v2286 = vperm.slane %v2284, 0
    %v2289 = vsel %vm180, %v2278, 0
    %v2292 = vsel %vm180, %v2279, 0
    %2294 = vmatpush.msra.mxu0 0.0
    %2295 = vmatpush.msra.mxu0 0.0
    %2296 = vmatpush.msra.mxu0 0.0
    %2297 = vmatpush.msra.mxu0 0.0
    %2298 = vmatpush.msra.mxu0 0.0
    %2299 = vmatpush.msra.mxu0 0.0
    %2300 = vmatpush.msra.mxu0 0.0
    %2301 = vmatpush.msra.mxu0 0.0
    %2302 = vmatpush.msra.mxu0 0.0
    %2303 = vmatpush.msra.mxu0 0.0
    %2304 = vmatpush.msra.mxu0 0.0
    %2305 = vmatpush.msra.mxu0 0.0
    %2306 = vmatpush.msra.mxu0 %v2283
    %2307 = vmatpush.msra.mxu0 %v2282
    %2308 = vmatpush.msra.mxu0 %v2281
    %2309 = vmatpush.msra.mxu0 %v2280
    %2310 = vmatmul.f32.gmra.mxu0 %v2289
    %v2311 = vpop.f32.mrf.mxu0
    %v2312 = vadd.f32 %v2286, %v2311
    %2313 = vmatmul.f32.gmra.mxu0 %v2292
    %v2314 = vpop.f32.mrf.mxu0
    %v2315 = vadd.f32 %v2286, %v2314
    %2316 = vdwg.mxu0
    %2317 = vst [vmem:[%s20] sm:$0xff] %v2312
    %2318 = vst [vmem:[%s20 + $0x8] sm:$0xff] %v2315
    // Predicated region
    $region102: #{csibert_forward.1} parent=1 // pred_check
      _
    $region103: #{csibert_forward.1} parent=1 // pred_check_branch
      %2320 = sbr.rel (0) target = $region105
    $region104: #{csibert_forward.1} parent=1 // pred_region
      _
    $region105: #{csibert_forward.1} parent=1 // pred_fallthru
      _
    // Predicated region
    $region106: #{csibert_forward.1} parent=1 // pred_check
      _
    $region107: #{csibert_forward.1} parent=1 // pred_check_branch
      %2322 = sbr.rel (0) target = $region109
    $region108: #{csibert_forward.1} parent=1 // pred_region
      _
    $region109: #{csibert_forward.1} parent=1 // pred_fallthru
      _
    %2323 = vsyncpa [#allocation3], 1
    %2324 = vsyncpa [#allocation5], 1
    %2325 = vsyncpa [#allocation8], 1

</llo_original>
